<compile_context>
chip_gen: v7x
topology: tpu7x:2x2x1
jax: 0.10.0
libtpu: 0.0.40
codegen_flags: <defaults>
</compile_context>

<pallas_src>
import functools

import jax
import jax.numpy as jnp
import numpy as np
from jax.experimental import pallas as pl
from jax.experimental.pallas import tpu as pltpu


def _round_up(x, m):
    return ((x + m - 1) // m) * m


def _bilstm_kernel(K, Tp, Hp, unroll,
                   len_ref, gx_ref, whh_ref, out_ref, h_ref, c_ref):
    """One grid step = K LSTM time steps of one direction.

    Grid = (direction, time_block). gx_ref holds precomputed pre-gates
    (x @ W_ih + b) for the current direction; the backward direction streams
    time-reversed blocks (via the index_map) and reads them back-to-front.
    Packed-sequence semantics are reproduced by only committing (h, c) for
    batch rows whose length exceeds the direction-specific time index.
    """
    d = pl.program_id(0)          # 0 = forward stream, 1 = backward stream
    blk = pl.program_id(1)        # time-block index (processing order)

    @pl.when(blk == 0)
    def _():
        h_ref[...] = jnp.zeros_like(h_ref)
        c_ref[...] = jnp.zeros_like(c_ref)

    lengths = len_ref[...]        # (Bp, 1) int32
    whh = whh_ref[...]            # (Hp, 4Hp), compute dtype (bf16 or f32)
    Bp = h_ref.shape[0]

    def step(k, carry):
        h, c = carry                                     # f32 (Bp, Hp)
        k_eff = k + d * (K - 1 - 2 * k)                  # fwd: k, bwd: K-1-k
        s = blk * K + k                                  # processing step in [0, Tp)
        t = s + d * (Tp - 1 - 2 * s)                     # actual (padded) time index
        gates = gx_ref[k_eff].astype(jnp.float32) + jnp.dot(
            h.astype(whh.dtype), whh, preferred_element_type=jnp.float32)
        # sigmoid(x) = 0.5*(1+tanh(x/2)): one EUP pass over the contiguous i|f slab.
        if_g = 0.5 * (1.0 + jnp.tanh(0.5 * gates[:, 0:2 * Hp]))
        i_g = if_g[:, 0:Hp]
        f_g = if_g[:, Hp:2 * Hp]
        g_g = jnp.tanh(gates[:, 2 * Hp:3 * Hp])
        o_g = 0.5 * (1.0 + jnp.tanh(0.5 * gates[:, 3 * Hp:4 * Hp]))
        c_new = f_g * c + i_g * g_g
        h_new = o_g * jnp.tanh(c_new)
        # Packed-sequence mask: broadcast once, reuse for both selects.
        m = jnp.broadcast_to(lengths > t, (Bp, Hp))
        return jnp.where(m, h_new, h), jnp.where(m, c_new, c)

    h_v, c_v = jax.lax.fori_loop(0, K, step, (h_ref[...], c_ref[...]),
                                 unroll=unroll)
    h_ref[...] = h_v
    c_ref[...] = c_v

    @pl.when(blk == pl.num_programs(1) - 1)
    def _():
        out_ref[...] = h_v


def _pad_gate_cols(w, H, Hp):
    """(rows, 4H) -> (rows, 4Hp) with each gate slab starting at k*Hp."""
    rows = w.shape[0]
    out = jnp.zeros((rows, 4 * Hp), jnp.float32)
    for k in range(4):
        out = out.at[:, k * Hp:k * Hp + H].set(w[:, k * H:(k + 1) * H])
    return out


def _pad_rows(w, rows_p):
    return jnp.pad(w, ((0, rows_p - w.shape[0]), (0, 0)))


def lstm_forward_pallas(embedded, lengths, params, *, time_block=8, unroll=4,
                        compute_dtype=jnp.bfloat16):
    """embedded: (T, B, E) f32, lengths: (B,) int -> (B, O) f32 logits."""
    T, B, E = embedded.shape
    H = params["whh_f"].shape[0]
    O = params["wfc"].shape[1]

    itemsize = jnp.dtype(compute_dtype).itemsize
    Hp = _round_up(max(H, 128), 128)            # lane-aligned gate width
    sub = 8 if itemsize >= 4 else 16            # sublane packing (f32 vs bf16)
    Bp = _round_up(max(B, sub), sub)            # sublane-aligned batch
    K = min(time_block, T)
    Tp = _round_up(T, K)
    nblk = Tp // K

    # ---- pad parameters to lane-aligned gate layout (fwd | bwd side-by-side) ----
    wih_all = jnp.concatenate(
        [_pad_gate_cols(params["wih_f"], H, Hp),
         _pad_gate_cols(params["wih_b"], H, Hp)], axis=1)          # (E, 8Hp) f32
    b_all = jnp.concatenate(
        [_pad_gate_cols(params["b_f"], H, Hp),
         _pad_gate_cols(params["b_b"], H, Hp)], axis=1)            # (1, 8Hp) f32
    whh_all = jnp.concatenate(
        [_pad_rows(_pad_gate_cols(params["whh_f"], H, Hp), Hp),
         _pad_rows(_pad_gate_cols(params["whh_b"], H, Hp), Hp)],
        axis=1).astype(compute_dtype)                              # (Hp, 8Hp)

    wfc_p = jnp.zeros((2 * Hp, O), jnp.float32)
    wfc_p = wfc_p.at[0:H, :].set(params["wfc"][0:H])
    wfc_p = wfc_p.at[Hp:Hp + H, :].set(params["wfc"][H:2 * H])

    # ---- pad activations / lengths ---------------------------------------------
    emb_p = jnp.zeros((T, Bp, E), jnp.float32).at[:, :B, :].set(embedded)
    lens_p = jnp.zeros((Bp, 1), jnp.int32).at[:B, 0].set(lengths.astype(jnp.int32))

    # ---- hoisted input projection: ONE fused matmul for both directions --------
    gx_all = (jnp.einsum("tbe,eg->tbg", emb_p, wih_all,
                         preferred_element_type=jnp.float32)
              + b_all).astype(compute_dtype)                       # (T, Bp, 8Hp)
    if Tp > T:
        gx_all = jnp.pad(gx_all, ((0, Tp - T), (0, 0), (0, 0)))

    kernel = functools.partial(_bilstm_kernel, K, Tp, Hp, min(K, unroll))

    # Backward direction (d=1) streams time blocks in reverse order.
    gx_map = lambda d, i: (i + d * (nblk - 1 - 2 * i), 0, d)

    grid_spec = pltpu.PrefetchScalarGridSpec(
        num_scalar_prefetch=0,
        grid=(2, nblk),                                   # (direction, time block)
        in_specs=[
            pl.BlockSpec((Bp, 1), lambda d, i: (0, 0)),                 # lengths
            pl.BlockSpec((K, Bp, 4 * Hp), gx_map),                      # pre-gates
            pl.BlockSpec((Hp, 4 * Hp), lambda d, i: (0, d),             # W_hh (const
                         pipeline_mode=pl.Buffered(1)),                 #  -> 1 buffer)
        ],
        out_specs=pl.BlockSpec((Bp, Hp), lambda d, i: (0, d)),
        scratch_shapes=[pltpu.VMEM((Bp, Hp), jnp.float32),   # h carry (f32)
                        pltpu.VMEM((Bp, Hp), jnp.float32)],  # c carry (f32)
    )

    # Re-derived VMEM budget: 2x pre-gate block + 1x W_hh block + carries + out.
    vmem_est = (2 * K * Bp * 4 * Hp * itemsize
                + Hp * 4 * Hp * itemsize
                + 4 * Bp * Hp * 4
                + 2 * Bp * 4)
    vmem_limit = int(min(max(2 * vmem_est, 32 << 20), 64 << 20))

    hid = pl.pallas_call(
        kernel,
        grid_spec=grid_spec,
        out_shape=jax.ShapeDtypeStruct((Bp, 2 * Hp), jnp.float32),
        compiler_params=pltpu.CompilerParams(
            # v7x: fwd/bwd directions split across the two TensorCores.
            dimension_semantics=("parallel", "arbitrary"),
            vmem_limit_bytes=vmem_limit),
    )(lens_p, gx_all, whh_all)

    # final fc in the wrapper (tiny; padded rows of wfc_p are zero)
    return hid[:B] @ wfc_p + params["bfc"]


def model_forward(text, text_lengths, params, **kwargs):
    """Full module forward: embedding gather + Pallas biLSTM + fc."""
    emb = params["embedding"][text].astype(jnp.float32)   # (T, B, E)
    # dropout(p=0.0) is the identity.
    return lstm_forward_pallas(emb, text_lengths, params, **kwargs)


def model_forward_ref(text, text_lengths, params):
    """Pure-JAX reference with identical packed-sequence semantics."""
    emb = params["embedding"][text].astype(jnp.float32)
    T, B, E = emb.shape
    H = params["whh_f"].shape[0]

    def cell(x, h, c, wih, whh, b):
        gates = x @ wih + h @ whh + b
        i = jax.nn.sigmoid(gates[:, :H])
        f = jax.nn.sigmoid(gates[:, H:2 * H])
        g = jnp.tanh(gates[:, 2 * H:3 * H])
        o = jax.nn.sigmoid(gates[:, 3 * H:])
        cn = f * c + i * g
        hn = o * jnp.tanh(cn)
        return hn, cn

    hf = jnp.zeros((B, H)); cf = jnp.zeros((B, H))
    hb = jnp.zeros((B, H)); cb = jnp.zeros((B, H))
    L = text_lengths.reshape(B, 1)
    for t in range(T):
        hn, cn = cell(emb[t], hf, cf, params["wih_f"], params["whh_f"], params["b_f"])
        m = L > t
        hf = jnp.where(m, hn, hf); cf = jnp.where(m, cn, cf)
        tb = T - 1 - t
        hn, cn = cell(emb[tb], hb, cb, params["wih_b"], params["whh_b"], params["b_b"])
        m = L > tb
        hb = jnp.where(m, hn, hb); cb = jnp.where(m, cn, cb)
    hid = jnp.concatenate([hf, hb], axis=1)
    return hid @ params["wfc"] + params["bfc"]


def init_params(key, vocab_size, E, H, O, pad_idx):
    ks = jax.random.split(key, 10)
    scale = 0.1
    emb = scale * jax.random.normal(ks[0], (vocab_size, E), jnp.float32)
    emb = emb.at[pad_idx].set(0.0)   # padding_idx row is zero
    params = {
        "embedding": emb,
        "wih_f": scale * jax.random.normal(ks[1], (E, 4 * H), jnp.float32),
        "whh_f": scale * jax.random.normal(ks[2], (H, 4 * H), jnp.float32),
        "b_f":   scale * jax.random.normal(ks[3], (1, 4 * H), jnp.float32),
        "wih_b": scale * jax.random.normal(ks[4], (E, 4 * H), jnp.float32),
        "whh_b": scale * jax.random.normal(ks[5], (H, 4 * H), jnp.float32),
        "b_b":   scale * jax.random.normal(ks[6], (1, 4 * H), jnp.float32),
        "wfc":   scale * jax.random.normal(ks[7], (2 * H, O), jnp.float32),
        "bfc":   scale * jax.random.normal(ks[8], (1, O), jnp.float32),
    }
    return params


if __name__ == "__main__":
    vocab_size, E, H, O = 50, 16, 32, 2
    T, B, pad_idx = 9, 4, 0

    key = jax.random.PRNGKey(0)
    pkey, tkey = jax.random.split(key)
    params = init_params(pkey, vocab_size, E, H, O, pad_idx)

    # lengths sorted descending (pack_padded_sequence default enforce_sorted=True)
    text_lengths = jnp.array([9, 6, 5, 3], dtype=jnp.int32)
    tokens = jax.random.randint(tkey, (T, B), 1, vocab_size, dtype=jnp.int32)
    # positions past each sequence's length are padding tokens
    t_idx = jnp.arange(T)[:, None]
    text = jnp.where(t_idx < text_lengths[None, :], tokens, pad_idx)

    ref = model_forward_ref(text, text_lengths, params)

    # f32 path: strict parity; time_block=4 exercises multi-block time grid and
    # the reversed backward-stream index_map.
    out32 = model_forward(text, text_lengths, params,
                          compute_dtype=jnp.float32, time_block=4)
    out32 = jax.block_until_ready(out32)
    np.testing.assert_allclose(np.asarray(out32), np.asarray(ref),
                               rtol=1e-5, atol=5e-5)

    # bf16 streamed pre-gates / weights (default perf config): relaxed parity.
    out16 = model_forward(text, text_lengths, params)
    out16 = jax.block_until_ready(out16)
    np.testing.assert_allclose(np.asarray(out16), np.asarray(ref),
                               rtol=2e-2, atol=2e-2)

    print("KERNEL_OK")
</pallas_src>

<mosaic_0001>
module attributes {stable_mosaic.version = 11 : i64} {
  func.func @_bilstm_kernel(%arg0: i32, %arg1: i32, %arg2: memref<8x1xi32, #tpu.memory_space<vmem>>, %arg3: memref<4x8x512xf32, #tpu.memory_space<vmem>>, %arg4: memref<128x512xf32, #tpu.memory_space<vmem>>, %arg5: memref<8x128xf32, #tpu.memory_space<vmem>>, %arg6: memref<8x128xf32, #tpu.memory_space<vmem>>, %arg7: memref<8x128xf32, #tpu.memory_space<vmem>>) attributes {dimension_semantics = [#tpu.dimension_semantics<parallel>, #tpu.dimension_semantics<arbitrary>], iteration_bounds = array<i64: 2, 3>, scalar_prefetch = 0 : i64, scratch_operands = 2 : i64, tpu.core_type = #tpu.core_type<tc>, window_params = [{pipeline_mode = #tpu.pipeline_mode<synchronous>, transform_indices = @transform_0, window_bounds = array<i64: 8, 1>}, {transform_indices = @transform_1, window_bounds = array<i64: 4, 8, 512>}, {pipeline_mode = #tpu.pipeline_mode<synchronous>, transform_indices = @transform_2, window_bounds = array<i64: 128, 512>}, {transform_indices = @transform_3, window_bounds = array<i64: 8, 128>}]} {
    %c0_i32 = arith.constant 0 : i32
    %0 = arith.cmpi eq, %arg1, %c0_i32 : i32
    %1 = arith.extui %0 : i1 to i32
    %c0_i32_0 = arith.constant 0 : i32
    %2 = arith.cmpi ne, %1, %c0_i32_0 : i32
    scf.if %2 {
      %cst_69 = arith.constant 0.000000e+00 : f32
      %196 = vector.broadcast %cst_69 : f32 to vector<8x128xf32>
      %c0_70 = arith.constant 0 : index
      %c0_71 = arith.constant 0 : index
      %197 = vector.load %arg6[%c0_70, %c0_71] : memref<8x128xf32, #tpu.memory_space<vmem>>, vector<8x128xf32>
      tpu.vector_store %arg6[%c0_70, %c0_71], %196 {strides = array<i32>} : memref<8x128xf32, #tpu.memory_space<vmem>>, vector<8x128xf32>,
      %cst_72 = arith.constant 0.000000e+00 : f32
      %198 = vector.broadcast %cst_72 : f32 to vector<8x128xf32>
      %c0_73 = arith.constant 0 : index
      %c0_74 = arith.constant 0 : index
      %199 = vector.load %arg7[%c0_73, %c0_74] : memref<8x128xf32, #tpu.memory_space<vmem>>, vector<8x128xf32>
      tpu.vector_store %arg7[%c0_73, %c0_74], %198 {strides = array<i32>} : memref<8x128xf32, #tpu.memory_space<vmem>>, vector<8x128xf32>,
    } else {
    }
    %c0 = arith.constant 0 : index
    %c0_1 = arith.constant 0 : index
    %3 = vector.load %arg2[%c0, %c0_1] : memref<8x1xi32, #tpu.memory_space<vmem>>, vector<8x1xi32>
    %c0_2 = arith.constant 0 : index
    %c0_3 = arith.constant 0 : index
    %4 = vector.load %arg4[%c0_2, %c0_3] : memref<128x512xf32, #tpu.memory_space<vmem>>, vector<128x512xf32>
    %c0_4 = arith.constant 0 : index
    %c0_5 = arith.constant 0 : index
    %5 = vector.load %arg6[%c0_4, %c0_5] : memref<8x128xf32, #tpu.memory_space<vmem>>, vector<8x128xf32>
    %c0_6 = arith.constant 0 : index
    %c0_7 = arith.constant 0 : index
    %6 = vector.load %arg7[%c0_6, %c0_7] : memref<8x128xf32, #tpu.memory_space<vmem>>, vector<8x128xf32>
    %c0_i32_8 = arith.constant 0 : i32
    %c2_i32 = arith.constant 2 : i32
    %7 = arith.muli %c2_i32, %c0_i32_8 : i32
    %c3_i32 = arith.constant 3 : i32
    %8 = arith.subi %c3_i32, %7 : i32
    %9 = arith.muli %arg0, %8 : i32
    %10 = arith.addi %c0_i32_8, %9 : i32
    %c4_i32 = arith.constant 4 : i32
    %11 = arith.muli %arg1, %c4_i32 : i32
    %12 = arith.addi %11, %c0_i32_8 : i32
    %c2_i32_9 = arith.constant 2 : i32
    %13 = arith.muli %c2_i32_9, %12 : i32
    %c11_i32 = arith.constant 11 : i32
    %14 = arith.subi %c11_i32, %13 : i32
    %15 = arith.muli %arg0, %14 : i32
    %16 = arith.addi %12, %15 : i32
    %17 = arith.index_cast %10 : i32 to index
    %c0_10 = arith.constant 0 : index
    %c0_11 = arith.constant 0 : index
    %18 = vector.load %arg3[%17, %c0_10, %c0_11] : memref<4x8x512xf32, #tpu.memory_space<vmem>>, vector<1x8x512xf32>
    %19 = vector.shape_cast %18 : vector<1x8x512xf32> to vector<8x512xf32>
    %cst = arith.constant dense<0.000000e+00> : vector<8x512xf32>
    %20 = tpu.matmul %5, %4, %cst {dimension_numbers = #tpu.dot_dimension_numbers<[1], [0], [0], [1], [0, 0, 1, 1], [], []>} : vector<8x128xf32>, vector<128x512xf32>, vector<8x512xf32> -> vector<8x512xf32>
    %21 = arith.addf %19, %20 : vector<8x512xf32>
    %22 = vector.extract_strided_slice %21 {offsets = [0, 0], sizes = [8, 256], strides = [1, 1]} : vector<8x512xf32> to vector<8x256xf32>
    %cst_12 = arith.constant 5.000000e-01 : f32
    %23 = vector.broadcast %cst_12 : f32 to vector<8x256xf32>
    %24 = arith.mulf %23, %22 : vector<8x256xf32>
    %25 = math.tanh %24 : vector<8x256xf32>
    %cst_13 = arith.constant 1.000000e+00 : f32
    %26 = vector.broadcast %cst_13 : f32 to vector<8x256xf32>
    %27 = arith.addf %26, %25 : vector<8x256xf32>
    %cst_14 = arith.constant 5.000000e-01 : f32
    %28 = vector.broadcast %cst_14 : f32 to vector<8x256xf32>
    %29 = arith.mulf %28, %27 : vector<8x256xf32>
    %30 = vector.extract_strided_slice %29 {offsets = [0, 0], sizes = [8, 128], strides = [1, 1]} : vector<8x256xf32> to vector<8x128xf32>
    %31 = vector.extract_strided_slice %29 {offsets = [0, 128], sizes = [8, 128], strides = [1, 1]} : vector<8x256xf32> to vector<8x128xf32>
    %32 = vector.extract_strided_slice %21 {offsets = [0, 256], sizes = [8, 128], strides = [1, 1]} : vector<8x512xf32> to vector<8x128xf32>
    %33 = math.tanh %32 : vector<8x128xf32>
    %34 = vector.extract_strided_slice %21 {offsets = [0, 384], sizes = [8, 128], strides = [1, 1]} : vector<8x512xf32> to vector<8x128xf32>
    %cst_15 = arith.constant 5.000000e-01 : f32
    %35 = vector.broadcast %cst_15 : f32 to vector<8x128xf32>
    %36 = arith.mulf %35, %34 : vector<8x128xf32>
    %37 = math.tanh %36 : vector<8x128xf32>
    %cst_16 = arith.constant 1.000000e+00 : f32
    %38 = vector.broadcast %cst_16 : f32 to vector<8x128xf32>
    %39 = arith.addf %38, %37 : vector<8x128xf32>
    %cst_17 = arith.constant 5.000000e-01 : f32
    %40 = vector.broadcast %cst_17 : f32 to vector<8x128xf32>
    %41 = arith.mulf %40, %39 : vector<8x128xf32>
    %42 = arith.mulf %31, %6 : vector<8x128xf32>
    %43 = arith.mulf %30, %33 : vector<8x128xf32>
    %44 = arith.addf %42, %43 : vector<8x128xf32>
    %45 = math.tanh %44 : vector<8x128xf32>
    %46 = arith.mulf %41, %45 : vector<8x128xf32>
    %47 = vector.broadcast %16 : i32 to vector<8x1xi32>
    %48 = arith.cmpi sgt, %3, %47 : vector<8x1xi32>
    %49 = vector.shape_cast %48 : vector<8x1xi1> to vector<8x1xi1>
    %50 = vector.broadcast %49 : vector<8x1xi1> to vector<8x128xi1>
    %51 = arith.select %50, %46, %5 : vector<8x128xi1>, vector<8x128xf32>
    %52 = arith.select %50, %44, %6 : vector<8x128xi1>, vector<8x128xf32>
    %c1_i32 = arith.constant 1 : i32
    %c2_i32_18 = arith.constant 2 : i32
    %53 = arith.muli %c2_i32_18, %c1_i32 : i32
    %c3_i32_19 = arith.constant 3 : i32
    %54 = arith.subi %c3_i32_19, %53 : i32
    %55 = arith.muli %arg0, %54 : i32
    %56 = arith.addi %c1_i32, %55 : i32
    %c4_i32_20 = arith.constant 4 : i32
    %57 = arith.muli %arg1, %c4_i32_20 : i32
    %58 = arith.addi %57, %c1_i32 : i32
    %c2_i32_21 = arith.constant 2 : i32
    %59 = arith.muli %c2_i32_21, %58 : i32
    %c11_i32_22 = arith.constant 11 : i32
    %60 = arith.subi %c11_i32_22, %59 : i32
    %61 = arith.muli %arg0, %60 : i32
    %62 = arith.addi %58, %61 : i32
    %63 = arith.index_cast %56 : i32 to index
    %c0_23 = arith.constant 0 : index
    %c0_24 = arith.constant 0 : index
    %64 = vector.load %arg3[%63, %c0_23, %c0_24] : memref<4x8x512xf32, #tpu.memory_space<vmem>>, vector<1x8x512xf32>
    %65 = vector.shape_cast %64 : vector<1x8x512xf32> to vector<8x512xf32>
    %cst_25 = arith.constant dense<0.000000e+00> : vector<8x512xf32>
    %66 = tpu.matmul %51, %4, %cst_25 {dimension_numbers = #tpu.dot_dimension_numbers<[1], [0], [0], [1], [0, 0, 1, 1], [], []>} : vector<8x128xf32>, vector<128x512xf32>, vector<8x512xf32> -> vector<8x512xf32>
    %67 = arith.addf %65, %66 : vector<8x512xf32>
    %68 = vector.extract_strided_slice %67 {offsets = [0, 0], sizes = [8, 256], strides = [1, 1]} : vector<8x512xf32> to vector<8x256xf32>
    %cst_26 = arith.constant 5.000000e-01 : f32
    %69 = vector.broadcast %cst_26 : f32 to vector<8x256xf32>
    %70 = arith.mulf %69, %68 : vector<8x256xf32>
    %71 = math.tanh %70 : vector<8x256xf32>
    %cst_27 = arith.constant 1.000000e+00 : f32
    %72 = vector.broadcast %cst_27 : f32 to vector<8x256xf32>
    %73 = arith.addf %72, %71 : vector<8x256xf32>
    %cst_28 = arith.constant 5.000000e-01 : f32
    %74 = vector.broadcast %cst_28 : f32 to vector<8x256xf32>
    %75 = arith.mulf %74, %73 : vector<8x256xf32>
    %76 = vector.extract_strided_slice %75 {offsets = [0, 0], sizes = [8, 128], strides = [1, 1]} : vector<8x256xf32> to vector<8x128xf32>
    %77 = vector.extract_strided_slice %75 {offsets = [0, 128], sizes = [8, 128], strides = [1, 1]} : vector<8x256xf32> to vector<8x128xf32>
    %78 = vector.extract_strided_slice %67 {offsets = [0, 256], sizes = [8, 128], strides = [1, 1]} : vector<8x512xf32> to vector<8x128xf32>
    %79 = math.tanh %78 : vector<8x128xf32>
    %80 = vector.extract_strided_slice %67 {offsets = [0, 384], sizes = [8, 128], strides = [1, 1]} : vector<8x512xf32> to vector<8x128xf32>
    %cst_29 = arith.constant 5.000000e-01 : f32
    %81 = vector.broadcast %cst_29 : f32 to vector<8x128xf32>
    %82 = arith.mulf %81, %80 : vector<8x128xf32>
    %83 = math.tanh %82 : vector<8x128xf32>
    %cst_30 = arith.constant 1.000000e+00 : f32
    %84 = vector.broadcast %cst_30 : f32 to vector<8x128xf32>
    %85 = arith.addf %84, %83 : vector<8x128xf32>
    %cst_31 = arith.constant 5.000000e-01 : f32
    %86 = vector.broadcast %cst_31 : f32 to vector<8x128xf32>
    %87 = arith.mulf %86, %85 : vector<8x128xf32>
    %88 = arith.mulf %77, %52 : vector<8x128xf32>
    %89 = arith.mulf %76, %79 : vector<8x128xf32>
    %90 = arith.addf %88, %89 : vector<8x128xf32>
    %91 = math.tanh %90 : vector<8x128xf32>
    %92 = arith.mulf %87, %91 : vector<8x128xf32>
    %93 = vector.broadcast %62 : i32 to vector<8x1xi32>
    %94 = arith.cmpi sgt, %3, %93 : vector<8x1xi32>
    %95 = vector.shape_cast %94 : vector<8x1xi1> to vector<8x1xi1>
    %96 = vector.broadcast %95 : vector<8x1xi1> to vector<8x128xi1>
    %97 = arith.select %96, %92, %51 : vector<8x128xi1>, vector<8x128xf32>
    %98 = arith.select %96, %90, %52 : vector<8x128xi1>, vector<8x128xf32>
    %c2_i32_32 = arith.constant 2 : i32
    %c2_i32_33 = arith.constant 2 : i32
    %99 = arith.muli %c2_i32_33, %c2_i32_32 : i32
    %c3_i32_34 = arith.constant 3 : i32
    %100 = arith.subi %c3_i32_34, %99 : i32
    %101 = arith.muli %arg0, %100 : i32
    %102 = arith.addi %c2_i32_32, %101 : i32
    %c4_i32_35 = arith.constant 4 : i32
    %103 = arith.muli %arg1, %c4_i32_35 : i32
    %104 = arith.addi %103, %c2_i32_32 : i32
    %c2_i32_36 = arith.constant 2 : i32
    %105 = arith.muli %c2_i32_36, %104 : i32
    %c11_i32_37 = arith.constant 11 : i32
    %106 = arith.subi %c11_i32_37, %105 : i32
    %107 = arith.muli %arg0, %106 : i32
    %108 = arith.addi %104, %107 : i32
    %109 = arith.index_cast %102 : i32 to index
    %c0_38 = arith.constant 0 : index
    %c0_39 = arith.constant 0 : index
    %110 = vector.load %arg3[%109, %c0_38, %c0_39] : memref<4x8x512xf32, #tpu.memory_space<vmem>>, vector<1x8x512xf32>
    %111 = vector.shape_cast %110 : vector<1x8x512xf32> to vector<8x512xf32>
    %cst_40 = arith.constant dense<0.000000e+00> : vector<8x512xf32>
    %112 = tpu.matmul %97, %4, %cst_40 {dimension_numbers = #tpu.dot_dimension_numbers<[1], [0], [0], [1], [0, 0, 1, 1], [], []>} : vector<8x128xf32>, vector<128x512xf32>, vector<8x512xf32> -> vector<8x512xf32>
    %113 = arith.addf %111, %112 : vector<8x512xf32>
    %114 = vector.extract_strided_slice %113 {offsets = [0, 0], sizes = [8, 256], strides = [1, 1]} : vector<8x512xf32> to vector<8x256xf32>
    %cst_41 = arith.constant 5.000000e-01 : f32
    %115 = vector.broadcast %cst_41 : f32 to vector<8x256xf32>
    %116 = arith.mulf %115, %114 : vector<8x256xf32>
    %117 = math.tanh %116 : vector<8x256xf32>
    %cst_42 = arith.constant 1.000000e+00 : f32
    %118 = vector.broadcast %cst_42 : f32 to vector<8x256xf32>
    %119 = arith.addf %118, %117 : vector<8x256xf32>
    %cst_43 = arith.constant 5.000000e-01 : f32
    %120 = vector.broadcast %cst_43 : f32 to vector<8x256xf32>
    %121 = arith.mulf %120, %119 : vector<8x256xf32>
    %122 = vector.extract_strided_slice %121 {offsets = [0, 0], sizes = [8, 128], strides = [1, 1]} : vector<8x256xf32> to vector<8x128xf32>
    %123 = vector.extract_strided_slice %121 {offsets = [0, 128], sizes = [8, 128], strides = [1, 1]} : vector<8x256xf32> to vector<8x128xf32>
    %124 = vector.extract_strided_slice %113 {offsets = [0, 256], sizes = [8, 128], strides = [1, 1]} : vector<8x512xf32> to vector<8x128xf32>
    %125 = math.tanh %124 : vector<8x128xf32>
    %126 = vector.extract_strided_slice %113 {offsets = [0, 384], sizes = [8, 128], strides = [1, 1]} : vector<8x512xf32> to vector<8x128xf32>
    %cst_44 = arith.constant 5.000000e-01 : f32
    %127 = vector.broadcast %cst_44 : f32 to vector<8x128xf32>
    %128 = arith.mulf %127, %126 : vector<8x128xf32>
    %129 = math.tanh %128 : vector<8x128xf32>
    %cst_45 = arith.constant 1.000000e+00 : f32
    %130 = vector.broadcast %cst_45 : f32 to vector<8x128xf32>
    %131 = arith.addf %130, %129 : vector<8x128xf32>
    %cst_46 = arith.constant 5.000000e-01 : f32
    %132 = vector.broadcast %cst_46 : f32 to vector<8x128xf32>
    %133 = arith.mulf %132, %131 : vector<8x128xf32>
    %134 = arith.mulf %123, %98 : vector<8x128xf32>
    %135 = arith.mulf %122, %125 : vector<8x128xf32>
    %136 = arith.addf %134, %135 : vector<8x128xf32>
    %137 = math.tanh %136 : vector<8x128xf32>
    %138 = arith.mulf %133, %137 : vector<8x128xf32>
    %139 = vector.broadcast %108 : i32 to vector<8x1xi32>
    %140 = arith.cmpi sgt, %3, %139 : vector<8x1xi32>
    %141 = vector.shape_cast %140 : vector<8x1xi1> to vector<8x1xi1>
    %142 = vector.broadcast %141 : vector<8x1xi1> to vector<8x128xi1>
    %143 = arith.select %142, %138, %97 : vector<8x128xi1>, vector<8x128xf32>
    %144 = arith.select %142, %136, %98 : vector<8x128xi1>, vector<8x128xf32>
    %c3_i32_47 = arith.constant 3 : i32
    %c2_i32_48 = arith.constant 2 : i32
    %145 = arith.muli %c2_i32_48, %c3_i32_47 : i32
    %c3_i32_49 = arith.constant 3 : i32
    %146 = arith.subi %c3_i32_49, %145 : i32
    %147 = arith.muli %arg0, %146 : i32
    %148 = arith.addi %c3_i32_47, %147 : i32
    %c4_i32_50 = arith.constant 4 : i32
    %149 = arith.muli %arg1, %c4_i32_50 : i32
    %150 = arith.addi %149, %c3_i32_47 : i32
    %c2_i32_51 = arith.constant 2 : i32
    %151 = arith.muli %c2_i32_51, %150 : i32
    %c11_i32_52 = arith.constant 11 : i32
    %152 = arith.subi %c11_i32_52, %151 : i32
    %153 = arith.muli %arg0, %152 : i32
    %154 = arith.addi %150, %153 : i32
    %155 = arith.index_cast %148 : i32 to index
    %c0_53 = arith.constant 0 : index
    %c0_54 = arith.constant 0 : index
    %156 = vector.load %arg3[%155, %c0_53, %c0_54] : memref<4x8x512xf32, #tpu.memory_space<vmem>>, vector<1x8x512xf32>
    %157 = vector.shape_cast %156 : vector<1x8x512xf32> to vector<8x512xf32>
    %cst_55 = arith.constant dense<0.000000e+00> : vector<8x512xf32>
    %158 = tpu.matmul %143, %4, %cst_55 {dimension_numbers = #tpu.dot_dimension_numbers<[1], [0], [0], [1], [0, 0, 1, 1], [], []>} : vector<8x128xf32>, vector<128x512xf32>, vector<8x512xf32> -> vector<8x512xf32>
    %159 = arith.addf %157, %158 : vector<8x512xf32>
    %160 = vector.extract_strided_slice %159 {offsets = [0, 0], sizes = [8, 256], strides = [1, 1]} : vector<8x512xf32> to vector<8x256xf32>
    %cst_56 = arith.constant 5.000000e-01 : f32
    %161 = vector.broadcast %cst_56 : f32 to vector<8x256xf32>
    %162 = arith.mulf %161, %160 : vector<8x256xf32>
    %163 = math.tanh %162 : vector<8x256xf32>
    %cst_57 = arith.constant 1.000000e+00 : f32
    %164 = vector.broadcast %cst_57 : f32 to vector<8x256xf32>
    %165 = arith.addf %164, %163 : vector<8x256xf32>
    %cst_58 = arith.constant 5.000000e-01 : f32
    %166 = vector.broadcast %cst_58 : f32 to vector<8x256xf32>
    %167 = arith.mulf %166, %165 : vector<8x256xf32>
    %168 = vector.extract_strided_slice %167 {offsets = [0, 0], sizes = [8, 128], strides = [1, 1]} : vector<8x256xf32> to vector<8x128xf32>
    %169 = vector.extract_strided_slice %167 {offsets = [0, 128], sizes = [8, 128], strides = [1, 1]} : vector<8x256xf32> to vector<8x128xf32>
    %170 = vector.extract_strided_slice %159 {offsets = [0, 256], sizes = [8, 128], strides = [1, 1]} : vector<8x512xf32> to vector<8x128xf32>
    %171 = math.tanh %170 : vector<8x128xf32>
    %172 = vector.extract_strided_slice %159 {offsets = [0, 384], sizes = [8, 128], strides = [1, 1]} : vector<8x512xf32> to vector<8x128xf32>
    %cst_59 = arith.constant 5.000000e-01 : f32
    %173 = vector.broadcast %cst_59 : f32 to vector<8x128xf32>
    %174 = arith.mulf %173, %172 : vector<8x128xf32>
    %175 = math.tanh %174 : vector<8x128xf32>
    %cst_60 = arith.constant 1.000000e+00 : f32
    %176 = vector.broadcast %cst_60 : f32 to vector<8x128xf32>
    %177 = arith.addf %176, %175 : vector<8x128xf32>
    %cst_61 = arith.constant 5.000000e-01 : f32
    %178 = vector.broadcast %cst_61 : f32 to vector<8x128xf32>
    %179 = arith.mulf %178, %177 : vector<8x128xf32>
    %180 = arith.mulf %169, %144 : vector<8x128xf32>
    %181 = arith.mulf %168, %171 : vector<8x128xf32>
    %182 = arith.addf %180, %181 : vector<8x128xf32>
    %183 = math.tanh %182 : vector<8x128xf32>
    %184 = arith.mulf %179, %183 : vector<8x128xf32>
    %185 = vector.broadcast %154 : i32 to vector<8x1xi32>
    %186 = arith.cmpi sgt, %3, %185 : vector<8x1xi32>
    %187 = vector.shape_cast %186 : vector<8x1xi1> to vector<8x1xi1>
    %188 = vector.broadcast %187 : vector<8x1xi1> to vector<8x128xi1>
    %189 = arith.select %188, %184, %143 : vector<8x128xi1>, vector<8x128xf32>
    %190 = arith.select %188, %182, %144 : vector<8x128xi1>, vector<8x128xf32>
    %c4_i32_62 = arith.constant 4 : i32
    %c0_63 = arith.constant 0 : index
    %c0_64 = arith.constant 0 : index
    %191 = vector.load %arg6[%c0_63, %c0_64] : memref<8x128xf32, #tpu.memory_space<vmem>>, vector<8x128xf32>
    tpu.vector_store %arg6[%c0_63, %c0_64], %189 {strides = array<i32>} : memref<8x128xf32, #tpu.memory_space<vmem>>, vector<8x128xf32>,
    %c0_65 = arith.constant 0 : index
    %c0_66 = arith.constant 0 : index
    %192 = vector.load %arg7[%c0_65, %c0_66] : memref<8x128xf32, #tpu.memory_space<vmem>>, vector<8x128xf32>
    tpu.vector_store %arg7[%c0_65, %c0_66], %190 {strides = array<i32>} : memref<8x128xf32, #tpu.memory_space<vmem>>, vector<8x128xf32>,
    %c2_i32_67 = arith.constant 2 : i32
    %193 = arith.cmpi eq, %arg1, %c2_i32_67 : i32
    %194 = arith.extui %193 : i1 to i32
    %c0_i32_68 = arith.constant 0 : i32
    %195 = arith.cmpi ne, %194, %c0_i32_68 : i32
    scf.if %195 {
      %c0_69 = arith.constant 0 : index
      %c0_70 = arith.constant 0 : index
      %196 = vector.load %arg5[%c0_69, %c0_70] : memref<8x128xf32, #tpu.memory_space<vmem>>, vector<8x128xf32>
      tpu.vector_store %arg5[%c0_69, %c0_70], %189 {strides = array<i32>} : memref<8x128xf32, #tpu.memory_space<vmem>>, vector<8x128xf32>,
    } else {
    }
    return
  }
  func.func @transform_0(%arg0: i32, %arg1: i32) -> (i32, i32) {
    %c0_i32 = arith.constant 0 : i32
    %c0_i32_0 = arith.constant 0 : i32
    %c0_i32_1 = arith.constant 0 : i32
    return %c0_i32, %c0_i32_0 : i32, i32
  }
  func.func @transform_1(%arg0: i32, %arg1: i32) -> (i32, i32, i32) {
    %c2_i32 = arith.constant 2 : i32
    %0 = arith.muli %c2_i32, %arg1 : i32
    %c2_i32_0 = arith.constant 2 : i32
    %1 = arith.subi %c2_i32_0, %0 : i32
    %2 = arith.muli %arg0, %1 : i32
    %3 = arith.addi %arg1, %2 : i32
    %c0_i32 = arith.constant 0 : i32
    %c0_i32_1 = arith.constant 0 : i32
    return %3, %c0_i32, %arg0 : i32, i32, i32
  }
  func.func @transform_2(%arg0: i32, %arg1: i32) -> (i32, i32) {
    %c0_i32 = arith.constant 0 : i32
    %c0_i32_0 = arith.constant 0 : i32
    return %c0_i32, %arg0 : i32, i32
  }
  func.func @transform_3(%arg0: i32, %arg1: i32) -> (i32, i32) {
    %c0_i32 = arith.constant 0 : i32
    %c0_i32_0 = arith.constant 0 : i32
    return %c0_i32, %arg0 : i32, i32
  }
}

</mosaic_0001>

<llo_original>
// kernel: tpu_custom_call.1
$region0: #{tpu_custom_call.1}
  #allocation0 [shape = 'u32[]', space=smem, size = 0x4, offset = 0x4, fixed_abs, tag = 'smem constant byte address 0x4 - core index']
  #allocation1 [shape = 'u32[144,128]{1,0:T(1,128)}', space=vmem, size = 0x12000, scoped, tag = 'internal scratch']
  #allocation2 [shape = 'f32[8,128]{1,0:T(8,128)}', space=vmem, size = 0x1000, scoped, tag = 'scratch operand']
  #allocation3 [shape = 'f32[8,128]{1,0:T(8,128)}', space=vmem, size = 0x1000, scoped, tag = 'scratch operand']
  %s0 = inlined_call_operand.vmem [shape: s32[8,1], index: 0, kind: input, shape index: {}]
  %s1 = inlined_call_operand.hbm [shape: f32[12,8,1024], index: 1, kind: input, shape index: {}]
  %s2 = inlined_call_operand.hbm [shape: f32[128,1024], index: 2, kind: input, shape index: {}]
  %s3 = inlined_call_operand.hbm [shape: f32[8,256], index: 3, kind: output, shape index: {}]
  %s4 = sld [smem:[#allocation0]]
  $region61: #{tpu_custom_call.1} parent=0
    _
  %s6 = ssub.s32 1, %s4
  %s7 = scalar_select 0, %s6, %s4
  $region1: #{tpu_custom_call.1} parent=0
    #allocation4 [shape = 'u8[131072]{0}', space=vmem, size = 0x20000, scoped, tag = 'input window, operand 1']
    #allocation5 [shape = 's32[2]{0}', space=sflag, size = 0x8, scoped, tag = 'scoped memory for tpu_custom_call.1']
    #allocation6 [shape = 's32[2]{0}', space=sflag, size = 0x8, scoped, tag = 'scoped memory for tpu_custom_call.1']
    #allocation7 [shape = 'u8[262144]{0}', space=vmem, size = 0x40000, scoped, tag = 'input window, operand 2, single buffered']
    #allocation8 [shape = 's32[1]{0}', space=sflag, size = 0x4, scoped, tag = 'scoped memory for tpu_custom_call.1']
    #allocation9 [shape = 'u8[8192]{0}', space=vmem, size = 0x2000, scoped, tag = 'output window, operand 0']
    %8 = vsyncpa [#allocation5], 0
    %s9 = scalar_lea.sflag [#allocation5], 1
    %10 = vsyncpa %s9, 0
    %11 = vsyncpa [#allocation8], 0
    %12 = vsyncpa [#allocation6], 0
    %s13 = scalar_lea.sflag [#allocation6], 1
    %14 = vsyncpa %s13, 0
    loop: start=0, step=1, limit=8
    $region2: #{tpu_custom_call.1} parent=1 // loop_pre_header
      _
    $region3: #{tpu_custom_call.1} parent=1 // loop_header
      %s16 = sphi 0, %s20
      %p17 = scmp.ge.s32.totalorder %s16, 8
      %s23 = sphi 0, %s35
      %s24 = sphi 0, %s31
      %s25 = sphi 0, %s23
      %s26 = sphi 0, %s24
      %s27 = sphi 0, %s25
      %s28 = sphi 0, %s26
      %s36 = sphi 0, %s36
      %s38 = sphi 0, %s36
      %s39 = sphi 0, %s38
      %s53 = sphi 0, %s39
      %s69 = sphi 0, %s71
      %s72 = sphi 0, %s69
      %s73 = sphi 0, %s72
      %s89 = sphi 0, %s73
      %s95 = sphi 0, %s97
      %s98 = sphi 0, %s95
      %s99 = sphi 0, %s98
      %s115 = sphi 0, %s99
      %s121 = sphi 0, %s123
      %s124 = sphi 0, %s121
      %s125 = sphi 0, %s124
      %s141 = sphi 0, %s125
    $region4: #{tpu_custom_call.1} parent=1 // loop_header_branch
      %19 = sbr.rel (%p17) target = $region8
    $region5: #{tpu_custom_call.1} parent=1 // loop_body
      %s21 = ssub.s32 %s16, 1
      %s22 = ssub.s32 %s16, 2
      %s29 = sadd.s32 1, %s24
      %p30 = scmp.ge.s32.totalorder %s29, 3
      %s31 = scalar_select %p30, 0, %s29
      %s32 = sadd.s32 1, %s23
      %s33 = scalar_select %p30, %s32, %s23
      %p34 = scmp.ge.s32.totalorder %s33, 2
      %s35 = scalar_select %p34, 0, %s33
      %s37 = sadd.s32 %s36, 1
      %p40 = scmp.eq.s32.totalorder %s16, 5
      %p41 = scmp.ne.s32.totalorder %s36, %s38
      %p42 = scmp.eq.s32.totalorder %s16, 0
      %p43 = por %p41, %p42
      %p44 = scmp.ne.s32.totalorder %s36, %s38
      %p45 = scmp.eq.s32.totalorder %s21, 5
      %p46 = por %p44, %p45
      %p47 = scmp.ne.s32.totalorder %s38, %s39
      %p48 = scmp.eq.s32.totalorder %s21, 0
      %p49 = por %p47, %p48
      %p50 = scmp.ne.s32.totalorder %s38, %s39
      %p51 = scmp.eq.s32.totalorder %s22, 5
      %p52 = por %p50, %p51
      %p54 = scmp.ne.s32.totalorder %s39, %s53
      %p55 = scmp.eq.s32.totalorder %s22, 0
      %p56 = por %p54, %p55
      %s57 = smul.u32 %s24, 2
      %s58 = ssub.s32 2, %s57
      %s59 = smul.u32 %s23, %s58
      %s60 = sadd.s32 %s24, %s59
      %s61 = smul.u32 %s31, 2
      %s62 = ssub.s32 2, %s61
      %s63 = smul.u32 %s35, %s62
      %s64 = sadd.s32 %s31, %s63
      %s65 = ssub.s32 %s60, %s64
      %s66 = ssub.s32 %s23, %s35
      %s67 = sor.u32 %s65, %s66
      %p68 = scmp.eq.s32.totalorder %s67, 0
      %s70 = sadd.s32 %s69, 1
      %s71 = scalar_select %p68, %s69, %s70
      %p74 = pneg %p68
      %p75 = scmp.eq.s32.totalorder %s16, 5
      %p76 = por %p74, %p75
      %p77 = scmp.ne.s32.totalorder %s69, %s72
      %p78 = scmp.eq.s32.totalorder %s16, 0
      %p79 = por %p77, %p78
      %p80 = scmp.ne.s32.totalorder %s69, %s72
      %p81 = scmp.eq.s32.totalorder %s21, 5
      %p82 = por %p80, %p81
      %p83 = scmp.ne.s32.totalorder %s72, %s73
      %p84 = scmp.eq.s32.totalorder %s21, 0
      %p85 = por %p83, %p84
      %p86 = scmp.ne.s32.totalorder %s72, %s73
      %p87 = scmp.eq.s32.totalorder %s22, 5
      %p88 = por %p86, %p87
      %p90 = scmp.ne.s32.totalorder %s73, %s89
      %p91 = scmp.eq.s32.totalorder %s22, 0
      %p92 = por %p90, %p91
      %s93 = ssub.s32 %s23, %s35
      %p94 = scmp.eq.s32.totalorder %s93, 0
      %s96 = sadd.s32 %s95, 1
      %s97 = scalar_select %p94, %s95, %s96
      %p100 = pneg %p94
      %p101 = scmp.eq.s32.totalorder %s16, 5
      %p102 = por %p100, %p101
      %p103 = scmp.ne.s32.totalorder %s95, %s98
      %p104 = scmp.eq.s32.totalorder %s16, 0
      %p105 = por %p103, %p104
      %p106 = scmp.ne.s32.totalorder %s95, %s98
      %p107 = scmp.eq.s32.totalorder %s21, 5
      %p108 = por %p106, %p107
      %p109 = scmp.ne.s32.totalorder %s98, %s99
      %p110 = scmp.eq.s32.totalorder %s21, 0
      %p111 = por %p109, %p110
      %p112 = scmp.ne.s32.totalorder %s98, %s99
      %p113 = scmp.eq.s32.totalorder %s22, 5
      %p114 = por %p112, %p113
      %p116 = scmp.ne.s32.totalorder %s99, %s115
      %p117 = scmp.eq.s32.totalorder %s22, 0
      %p118 = por %p116, %p117
      %s119 = ssub.s32 %s23, %s35
      %p120 = scmp.eq.s32.totalorder %s119, 0
      %s122 = sadd.s32 %s121, 1
      %s123 = scalar_select %p120, %s121, %s122
      %p126 = pneg %p120
      %p127 = scmp.eq.s32.totalorder %s16, 5
      %p128 = por %p126, %p127
      %p129 = scmp.ne.s32.totalorder %s121, %s124
      %p130 = scmp.eq.s32.totalorder %s16, 0
      %p131 = por %p129, %p130
      %p132 = scmp.ne.s32.totalorder %s121, %s124
      %p133 = scmp.eq.s32.totalorder %s21, 5
      %p134 = por %p132, %p133
      %p135 = scmp.ne.s32.totalorder %s124, %s125
      %p136 = scmp.eq.s32.totalorder %s21, 0
      %p137 = por %p135, %p136
      %p138 = scmp.ne.s32.totalorder %s124, %s125
      %p139 = scmp.eq.s32.totalorder %s22, 5
      %p140 = por %p138, %p139
      %p142 = scmp.ne.s32.totalorder %s125, %s141
      %p143 = scmp.eq.s32.totalorder %s22, 0
      %p144 = por %p142, %p143
      %p145 = scmp.le.s32.totalorder 1, %s16
      %p146 = scmp.lt.s32.totalorder %s16, 7
      %p147 = pnand %p145, %p146
      %p148 = pneg %p147
      // Predicated region
      $region9: #{tpu_custom_call.1} parent=5 // pred_check
        _
      $region10: #{tpu_custom_call.1} parent=5 // pred_check_branch
        %150 = sbr.rel (%p147) target = $region12
      $region11: #{tpu_custom_call.1} parent=5 // pred_region
        %s151 = ssub.s32 %s16, 1
        // Predicated region
        $region13: #{tpu_custom_call.1} parent=11 // pred_check
          %p152 = pneg %p49
        $region14: #{tpu_custom_call.1} parent=11 // pred_check_branch
          %154 = sbr.rel (%p152) target = $region16
        $region15: #{tpu_custom_call.1} parent=11 // pred_region
          _
        $region16: #{tpu_custom_call.1} parent=11 // pred_fallthru
          _
        // Predicated region
        $region17: #{tpu_custom_call.1} parent=11 // pred_check
          %p155 = pneg %p111
        $region18: #{tpu_custom_call.1} parent=11 // pred_check_branch
          %157 = sbr.rel (%p155) target = $region20
        $region19: #{tpu_custom_call.1} parent=11 // pred_region
          %s158 = smul.u32 4, %s25
          %s160 = ssub.s32 8192, 8192
          %161 = vsyncadd [#allocation8], %s160
          %s162 = smul.addr %s158, 128
          %s163 = scalar_lea.hbm %s2, %s162
          %s164 = sshll.u32 [#allocation7], 4
          %s165 = int_to_ptr.vmem [resolvable:$true] %s164
          %170 = dma.hbm_to_vmem [thread:$0]  %s163, 8192, %s165, [#allocation8], 1024, 512, 32
        $region20: #{tpu_custom_call.1} parent=11 // pred_fallthru
          _
      $region12: #{tpu_custom_call.1} parent=5 // pred_fallthru
        _
      %p171 = scmp.lt.s32.totalorder %s16, 6
      // Predicated region
      $region21: #{tpu_custom_call.1} parent=5 // pred_check
        %p172 = pneg %p171
      $region22: #{tpu_custom_call.1} parent=5 // pred_check_branch
        %174 = sbr.rel (%p172) target = $region24
      $region23: #{tpu_custom_call.1} parent=5 // pred_region
        // Predicated region
        $region25: #{tpu_custom_call.1} parent=23 // pred_check
          %p175 = pneg %p79
        $region26: #{tpu_custom_call.1} parent=23 // pred_check_branch
          %177 = sbr.rel (%p175) target = $region28
        $region27: #{tpu_custom_call.1} parent=23 // pred_region
          %s178 = sand.u32 %s69, 1
          %s179 = scalar_lea.sflag [#allocation5], %s178
          %s180 = sand.u32 %s69, 1
          %s181 = smul.addr %s180, 128
          %s182 = scalar_lea.vmem [#allocation4], %s181
          %s183 = smul.u32 %s24, 2
          %s184 = ssub.s32 2, %s183
          %s185 = smul.u32 %s23, %s184
          %s186 = sadd.s32 %s24, %s185
          %s187 = smul.u32 4, %s186
          %s188 = smul.u32 4, %s23
          %s190 = ssub.s32 2048, 2048
          %191 = vsyncadd %s179, %s190
          %s192 = smul.addr %s187, 8
          %s193 = sadd.s32 %s188, %s192
          %s194 = smul.addr %s193, 128
          %s195 = scalar_lea.hbm %s1, %s194
          %s196 = sshll.u32 %s182, 4
          %s197 = int_to_ptr.vmem [resolvable:$true] %s196
          %202 = dma.hbm_to_vmem [thread:$0]  %s195, 2048, %s197, %s179, 1024, 512, 32
        $region28: #{tpu_custom_call.1} parent=23 // pred_fallthru
          _
      $region24: #{tpu_custom_call.1} parent=5 // pred_fallthru
        _
      %p203 = scmp.le.s32.totalorder 1, %s16
      %p204 = scmp.lt.s32.totalorder %s16, 7
      %p205 = pnand %p203, %p204
      %p206 = pneg %p205
      // Predicated region
      $region29: #{tpu_custom_call.1} parent=5 // pred_check
        _
      $region30: #{tpu_custom_call.1} parent=5 // pred_check_branch
        %208 = sbr.rel (%p205) target = $region32
      $region31: #{tpu_custom_call.1} parent=5 // pred_region
        %s209 = ssub.s32 %s16, 1
        %s210 = sand.u32 %s72, 1
        %s211 = scalar_lea.sflag [#allocation5], %s210
        %s212 = sand.u32 %s72, 1
        %s213 = smul.addr %s212, 128
        %s214 = scalar_lea.vmem [#allocation4], %s213
        // Predicated region
        $region33: #{tpu_custom_call.1} parent=31 // pred_check
          %p215 = pneg %p85
        $region34: #{tpu_custom_call.1} parent=31 // pred_check_branch
          %217 = sbr.rel (%p215) target = $region36
        $region35: #{tpu_custom_call.1} parent=31 // pred_region
          %218 = dma.done %s211, 2048
        $region36: #{tpu_custom_call.1} parent=31 // pred_fallthru
          _
        // Predicated region
        $region37: #{tpu_custom_call.1} parent=31 // pred_check
          %p219 = pneg %p111
        $region38: #{tpu_custom_call.1} parent=31 // pred_check_branch
          %221 = sbr.rel (%p219) target = $region40
        $region39: #{tpu_custom_call.1} parent=31 // pred_region
          %222 = dma.done [#allocation8], 8192
        $region40: #{tpu_custom_call.1} parent=31 // pred_fallthru
          _
        %p223 = pneg %p49
        %p224 = pneg %p46
        %s225 = sand.u32 %s72, 1
        %s226 = scalar_lea.sflag [#allocation5], %s225
        %s227 = sand.u32 %s72, 1
        %s228 = smul.addr %s227, 128
        %s229 = scalar_lea.vmem [#allocation4], %s228
        %p230 = pneg %p85
        %p231 = pneg %p82
        %p232 = pneg %p111
        %p233 = pneg %p108
        %p234 = pneg %p137
        %p235 = pneg %p134
        %s236 = sand.u32 %s124, 1
        %s237 = scalar_lea.sflag [#allocation6], %s236
        %s238 = sand.u32 %s124, 1
        %s239 = smul.addr %s238, 8
        %s240 = scalar_lea.vmem [#allocation9], %s239
        %s241 = smul.u32 %s26, 2
        %s242 = ssub.s32 2, %s241
        %s243 = smul.u32 %s25, %s242
        %s244 = sadd.s32 %s26, %s243
        %s245 = smul.u32 4, %s244
        %s246 = smul.u32 4, %s25
        %s247 = smul.u32 4, %s25
        %p248 = scmp.eq.s32.totalorder %s26, 0
        // Predicated region
        $region41: #{tpu_custom_call.1} parent=31 // pred_check
          %p249 = pneg %p248
        $region42: #{tpu_custom_call.1} parent=31 // pred_check_branch
          %251 = sbr.rel (%p249) target = $region44
        $region43: #{tpu_custom_call.1} parent=31 // pred_region
          %252 = vst [vmem:[#allocation2] sm:$0xff] 0.0
          %253 = vst [vmem:[#allocation3] sm:$0xff] 0.0
        $region44: #{tpu_custom_call.1} parent=31 // pred_fallthru
          _
        %v254 = vld [vmem:[%s0] sm:$0xff]
        %v255 = vld [vmem:[#allocation7] sm:$0xff]
        %v256 = vld [vmem:[#allocation7 + $0x8] sm:$0xff]
        %v257 = vld [vmem:[#allocation7 + $0x10] sm:$0xff]
        %v258 = vld [vmem:[#allocation7 + $0x18] sm:$0xff]
        %v259 = vld [vmem:[#allocation7 + $0x20] sm:$0xff]
        %v260 = vld [vmem:[#allocation7 + $0x28] sm:$0xff]
        %v261 = vld [vmem:[#allocation7 + $0x30] sm:$0xff]
        %v262 = vld [vmem:[#allocation7 + $0x38] sm:$0xff]
        %v263 = vld [vmem:[#allocation7 + $0x40] sm:$0xff]
        %v264 = vld [vmem:[#allocation7 + $0x48] sm:$0xff]
        %v265 = vld [vmem:[#allocation7 + $0x50] sm:$0xff]
        %v266 = vld [vmem:[#allocation7 + $0x58] sm:$0xff]
        %v267 = vld [vmem:[#allocation7 + $0x60] sm:$0xff]
        %v268 = vld [vmem:[#allocation7 + $0x68] sm:$0xff]
        %v269 = vld [vmem:[#allocation7 + $0x70] sm:$0xff]
        %v270 = vld [vmem:[#allocation7 + $0x78] sm:$0xff]
        %v271 = vld [vmem:[#allocation7 + $0x80] sm:$0xff]
        %v272 = vld [vmem:[#allocation7 + $0x88] sm:$0xff]
        %v273 = vld [vmem:[#allocation7 + $0x90] sm:$0xff]
        %v274 = vld [vmem:[#allocation7 + $0x98] sm:$0xff]
        %v275 = vld [vmem:[#allocation7 + $0xa0] sm:$0xff]
        %v276 = vld [vmem:[#allocation7 + $0xa8] sm:$0xff]
        %v277 = vld [vmem:[#allocation7 + $0xb0] sm:$0xff]
        %v278 = vld [vmem:[#allocation7 + $0xb8] sm:$0xff]
        %v279 = vld [vmem:[#allocation7 + $0xc0] sm:$0xff]
        %v280 = vld [vmem:[#allocation7 + $0xc8] sm:$0xff]
        %v281 = vld [vmem:[#allocation7 + $0xd0] sm:$0xff]
        %v282 = vld [vmem:[#allocation7 + $0xd8] sm:$0xff]
        %v283 = vld [vmem:[#allocation7 + $0xe0] sm:$0xff]
        %v284 = vld [vmem:[#allocation7 + $0xe8] sm:$0xff]
        %v285 = vld [vmem:[#allocation7 + $0xf0] sm:$0xff]
        %v286 = vld [vmem:[#allocation7 + $0xf8] sm:$0xff]
        %v287 = vld [vmem:[#allocation7 + $0x100] sm:$0xff]
        %v288 = vld [vmem:[#allocation7 + $0x108] sm:$0xff]
        %v289 = vld [vmem:[#allocation7 + $0x110] sm:$0xff]
        %v290 = vld [vmem:[#allocation7 + $0x118] sm:$0xff]
        %v291 = vld [vmem:[#allocation7 + $0x120] sm:$0xff]
        %v292 = vld [vmem:[#allocation7 + $0x128] sm:$0xff]
        %v293 = vld [vmem:[#allocation7 + $0x130] sm:$0xff]
        %v294 = vld [vmem:[#allocation7 + $0x138] sm:$0xff]
        %v295 = vld [vmem:[#allocation7 + $0x140] sm:$0xff]
        %v296 = vld [vmem:[#allocation7 + $0x148] sm:$0xff]
        %v297 = vld [vmem:[#allocation7 + $0x150] sm:$0xff]
        %v298 = vld [vmem:[#allocation7 + $0x158] sm:$0xff]
        %v299 = vld [vmem:[#allocation7 + $0x160] sm:$0xff]
        %v300 = vld [vmem:[#allocation7 + $0x168] sm:$0xff]
        %v301 = vld [vmem:[#allocation7 + $0x170] sm:$0xff]
        %v302 = vld [vmem:[#allocation7 + $0x178] sm:$0xff]
        %v303 = vld [vmem:[#allocation7 + $0x180] sm:$0xff]
        %v304 = vld [vmem:[#allocation7 + $0x188] sm:$0xff]
        %v305 = vld [vmem:[#allocation7 + $0x190] sm:$0xff]
        %v306 = vld [vmem:[#allocation7 + $0x198] sm:$0xff]
        %v307 = vld [vmem:[#allocation7 + $0x1a0] sm:$0xff]
        %v308 = vld [vmem:[#allocation7 + $0x1a8] sm:$0xff]
        %v309 = vld [vmem:[#allocation7 + $0x1b0] sm:$0xff]
        %v310 = vld [vmem:[#allocation7 + $0x1b8] sm:$0xff]
        %v311 = vld [vmem:[#allocation7 + $0x1c0] sm:$0xff]
        %v312 = vld [vmem:[#allocation7 + $0x1c8] sm:$0xff]
        %v313 = vld [vmem:[#allocation7 + $0x1d0] sm:$0xff]
        %v314 = vld [vmem:[#allocation7 + $0x1d8] sm:$0xff]
        %v315 = vld [vmem:[#allocation7 + $0x1e0] sm:$0xff]
        %v316 = vld [vmem:[#allocation7 + $0x1e8] sm:$0xff]
        %v317 = vld [vmem:[#allocation7 + $0x1f0] sm:$0xff]
        %v318 = vld [vmem:[#allocation7 + $0x1f8] sm:$0xff]
        %v319 = vld [vmem:[#allocation2] sm:$0xff]
        %v320 = vld [vmem:[#allocation3] sm:$0xff]
        %s321 = smul.u32 %s25, 3
        %s322 = smul.u32 %s26, 4
        %s323 = smul.u32 %s26, 8
        %s324 = ssub.s32 11, %s323
        %s325 = smul.u32 %s25, %s324
        %s326 = sadd.s32 %s322, %s325
        %s327 = smul.u32 %s321, 4
        %s328 = smul.addr %s327, 8
        %s329 = scalar_lea.vmem %s214, %s328 [#allocation4]
        %v330 = vld [vmem:[%s329] sm:$0xff]
        %v331 = vld [vmem:[%s329 + $0x8] sm:$0xff]
        %v332 = vld [vmem:[%s329 + $0x10] sm:$0xff]
        %v333 = vld [vmem:[%s329 + $0x18] sm:$0xff]
        %334 = vmatprep.subr.mxu0 %v256
        %335 = vmatpush1.msra.mxu0 %v255
        %336 = vmatprep.subr.mxu0 %v260
        %337 = vmatpush1.msra.mxu0 %v259
        %338 = vmatprep.subr.mxu0 %v264
        %339 = vmatpush1.msra.mxu0 %v263
        %340 = vmatprep.subr.mxu0 %v268
        %341 = vmatpush1.msra.mxu0 %v267
        %342 = vmatprep.subr.mxu0 %v272
        %343 = vmatpush1.msra.mxu0 %v271
        %344 = vmatprep.subr.mxu0 %v276
        %345 = vmatpush1.msra.mxu0 %v275
        %346 = vmatprep.subr.mxu0 %v280
        %347 = vmatpush1.msra.mxu0 %v279
        %348 = vmatprep.subr.mxu0 %v284
        %349 = vmatpush1.msra.mxu0 %v283
        %350 = vmatprep.subr.mxu0 %v288
        %351 = vmatpush1.msra.mxu0 %v287
        %352 = vmatprep.subr.mxu0 %v292
        %353 = vmatpush1.msra.mxu0 %v291
        %354 = vmatprep.subr.mxu0 %v296
        %355 = vmatpush1.msra.mxu0 %v295
        %356 = vmatprep.subr.mxu0 %v300
        %357 = vmatpush1.msra.mxu0 %v299
        %358 = vmatprep.subr.mxu0 %v304
        %359 = vmatpush1.msra.mxu0 %v303
        %360 = vmatprep.subr.mxu0 %v308
        %361 = vmatpush1.msra.mxu0 %v307
        %362 = vmatprep.subr.mxu0 %v312
        %363 = vmatpush1.msra.mxu0 %v311
        %364 = vmatprep.subr.mxu0 %v316
        %365 = vmatpush1.msra.mxu0 %v315
        %366 = vmatprep.subr.mxu0 0.0
        %367 = vmatpush1.msra.mxu0 0.0
        %368 = vmatprep.subr.mxu0 0.0
        %369 = vmatpush1.msra.mxu0 0.0
        %370 = vmatprep.subr.mxu0 0.0
        %371 = vmatpush1.msra.mxu0 0.0
        %372 = vmatprep.subr.mxu0 0.0
        %373 = vmatpush1.msra.mxu0 0.0
        %374 = vmatprep.subr.mxu0 0.0
        %375 = vmatpush1.msra.mxu0 0.0
        %376 = vmatprep.subr.mxu0 0.0
        %377 = vmatpush1.msra.mxu0 0.0
        %378 = vmatprep.subr.mxu0 0.0
        %379 = vmatpush1.msra.mxu0 0.0
        %380 = vmatprep.subr.mxu0 0.0
        %381 = vmatpush1.msra.mxu0 0.0
        %382 = vmatprep.subr.mxu0 0.0
        %383 = vmatpush1.msra.mxu0 0.0
        %384 = vmatprep.subr.mxu0 0.0
        %385 = vmatpush1.msra.mxu0 0.0
        %386 = vmatprep.subr.mxu0 0.0
        %387 = vmatpush1.msra.mxu0 0.0
        %388 = vmatprep.subr.mxu0 0.0
        %389 = vmatpush1.msra.mxu0 0.0
        %390 = vmatprep.subr.mxu0 0.0
        %391 = vmatpush1.msra.mxu0 0.0
        %392 = vmatprep.subr.mxu0 0.0
        %393 = vmatpush1.msra.mxu0 0.0
        %394 = vmatprep.subr.mxu0 0.0
        %395 = vmatpush1.msra.mxu0 0.0
        %396 = vmatprep.subr.mxu0 0.0
        %397 = vmatpush1.msra.mxu0 0.0
        %398 = vmatprep.mubr.f32.mxu0 0.0
        %399 = vmatmul.mubr.f32.gmra.mrb[0].mxu0 %v319
        %v400 = vpop.f32.mrb[0].mxu0
        %v401 = vadd.f32 0.0, %v400
        %v402 = vpop.f32.mrb[0].mxu0
        %v403 = vadd.f32 0.0, %v402
        %404 = vdwg.mxu0
        %405 = vmatprep.subr.mxu0 %v258
        %406 = vmatpush1.msra.mxu0 %v257
        %407 = vmatprep.subr.mxu0 %v262
        %408 = vmatpush1.msra.mxu0 %v261
        %409 = vmatprep.subr.mxu0 %v266
        %410 = vmatpush1.msra.mxu0 %v265
        %411 = vmatprep.subr.mxu0 %v270
        %412 = vmatpush1.msra.mxu0 %v269
        %413 = vmatprep.subr.mxu0 %v274
        %414 = vmatpush1.msra.mxu0 %v273
        %415 = vmatprep.subr.mxu0 %v278
        %416 = vmatpush1.msra.mxu0 %v277
        %417 = vmatprep.subr.mxu0 %v282
        %418 = vmatpush1.msra.mxu0 %v281
        %419 = vmatprep.subr.mxu0 %v286
        %420 = vmatpush1.msra.mxu0 %v285
        %421 = vmatprep.subr.mxu0 %v290
        %422 = vmatpush1.msra.mxu0 %v289
        %423 = vmatprep.subr.mxu0 %v294
        %424 = vmatpush1.msra.mxu0 %v293
        %425 = vmatprep.subr.mxu0 %v298
        %426 = vmatpush1.msra.mxu0 %v297
        %427 = vmatprep.subr.mxu0 %v302
        %428 = vmatpush1.msra.mxu0 %v301
        %429 = vmatprep.subr.mxu0 %v306
        %430 = vmatpush1.msra.mxu0 %v305
        %431 = vmatprep.subr.mxu0 %v310
        %432 = vmatpush1.msra.mxu0 %v309
        %433 = vmatprep.subr.mxu0 %v314
        %434 = vmatpush1.msra.mxu0 %v313
        %435 = vmatprep.subr.mxu0 %v318
        %436 = vmatpush1.msra.mxu0 %v317
        %437 = vmatprep.subr.mxu0 0.0
        %438 = vmatpush1.msra.mxu0 0.0
        %439 = vmatprep.subr.mxu0 0.0
        %440 = vmatpush1.msra.mxu0 0.0
        %441 = vmatprep.subr.mxu0 0.0
        %442 = vmatpush1.msra.mxu0 0.0
        %443 = vmatprep.subr.mxu0 0.0
        %444 = vmatpush1.msra.mxu0 0.0
        %445 = vmatprep.subr.mxu0 0.0
        %446 = vmatpush1.msra.mxu0 0.0
        %447 = vmatprep.subr.mxu0 0.0
        %448 = vmatpush1.msra.mxu0 0.0
        %449 = vmatprep.subr.mxu0 0.0
        %450 = vmatpush1.msra.mxu0 0.0
        %451 = vmatprep.subr.mxu0 0.0
        %452 = vmatpush1.msra.mxu0 0.0
        %453 = vmatprep.subr.mxu0 0.0
        %454 = vmatpush1.msra.mxu0 0.0
        %455 = vmatprep.subr.mxu0 0.0
        %456 = vmatpush1.msra.mxu0 0.0
        %457 = vmatprep.subr.mxu0 0.0
        %458 = vmatpush1.msra.mxu0 0.0
        %459 = vmatprep.subr.mxu0 0.0
        %460 = vmatpush1.msra.mxu0 0.0
        %461 = vmatprep.subr.mxu0 0.0
        %462 = vmatpush1.msra.mxu0 0.0
        %463 = vmatprep.subr.mxu0 0.0
        %464 = vmatpush1.msra.mxu0 0.0
        %465 = vmatprep.subr.mxu0 0.0
        %466 = vmatpush1.msra.mxu0 0.0
        %467 = vmatprep.subr.mxu0 0.0
        %468 = vmatpush1.msra.mxu0 0.0
        %469 = vmatprep.mubr.f32.mxu0 0.0
        %470 = vmatmul.mubr.f32.gmra.mrb[0].mxu0 %v319
        %v471 = vpop.f32.mrb[0].mxu0
        %v472 = vadd.f32 0.0, %v471
        %v473 = vpop.f32.mrb[0].mxu0
        %v474 = vadd.f32 0.0, %v473
        %475 = vdwg.mxu0
        %v476 = vadd.f32 %v330, %v401
        %v477 = vadd.f32 %v331, %v403
        %v478 = vadd.f32 %v332, %v472
        %v479 = vadd.f32 %v333, %v474
        %v480 = vmul.f32 %v476, 0.5
        %v481 = vmul.f32 %v477, 0.5
        %v482 = vtanh.pop %v480
        %v483 = vtanh.pop %v481
        %v484 = vadd.f32 %v482, 1.0
        %v485 = vadd.f32 %v483, 1.0
        %v486 = vmul.f32 %v484, 0.5
        %v487 = vmul.f32 %v485, 0.5
        %v488 = vtanh.pop %v478
        %v489 = vmul.f32 %v479, 0.5
        %v490 = vtanh.pop %v489
        %v491 = vadd.f32 %v490, 1.0
        %v492 = vmul.f32 %v491, 0.5
        %v493 = vmul.f32 %v487, %v320
        %v494 = vmul.f32 %v486, %v488
        %v495 = vadd.f32 %v493, %v494
        %v496 = vtanh.pop %v495
        %v497 = vmul.f32 %v492, %v496
        %v498 = vstv %s326
        %vm499 = vcmp.gt.s32.totalorder %v254, %v498
        %v500 = vsel %vm499, 1, 0
        %501 = vset.pattern.permute.xlu0 0
        %502 = vperm.xlu0 %501, %v500
        %v503 = vpop.permute.xlu0 %502
        %vm504 = vcmp.eq.s32.totalorder %v503, 1
        %v505 = vsel %vm504, %v497, %v319
        %v506 = vsel %vm504, %v495, %v320
        %s507 = sadd.s32 %s25, 1
        %s508 = sadd.s32 %s322, 1
        %s509 = smul.u32 %s508, 2
        %s510 = ssub.s32 11, %s509
        %s511 = smul.u32 %s25, %s510
        %s512 = sadd.s32 %s508, %s511
        %s513 = smul.u32 %s507, 4
        %s514 = smul.addr %s513, 8
        %s515 = scalar_lea.vmem %s214, %s514 [#allocation4]
        %v516 = vld [vmem:[%s515] sm:$0xff]
        %v517 = vld [vmem:[%s515 + $0x8] sm:$0xff]
        %v518 = vld [vmem:[%s515 + $0x10] sm:$0xff]
        %v519 = vld [vmem:[%s515 + $0x18] sm:$0xff]
        %520 = vmatprep.subr.mxu0 %v256
        %521 = vmatpush1.msra.mxu0 %v255
        %522 = vmatprep.subr.mxu0 %v260
        %523 = vmatpush1.msra.mxu0 %v259
        %524 = vmatprep.subr.mxu0 %v264
        %525 = vmatpush1.msra.mxu0 %v263
        %526 = vmatprep.subr.mxu0 %v268
        %527 = vmatpush1.msra.mxu0 %v267
        %528 = vmatprep.subr.mxu0 %v272
        %529 = vmatpush1.msra.mxu0 %v271
        %530 = vmatprep.subr.mxu0 %v276
        %531 = vmatpush1.msra.mxu0 %v275
        %532 = vmatprep.subr.mxu0 %v280
        %533 = vmatpush1.msra.mxu0 %v279
        %534 = vmatprep.subr.mxu0 %v284
        %535 = vmatpush1.msra.mxu0 %v283
        %536 = vmatprep.subr.mxu0 %v288
        %537 = vmatpush1.msra.mxu0 %v287
        %538 = vmatprep.subr.mxu0 %v292
        %539 = vmatpush1.msra.mxu0 %v291
        %540 = vmatprep.subr.mxu0 %v296
        %541 = vmatpush1.msra.mxu0 %v295
        %542 = vmatprep.subr.mxu0 %v300
        %543 = vmatpush1.msra.mxu0 %v299
        %544 = vmatprep.subr.mxu0 %v304
        %545 = vmatpush1.msra.mxu0 %v303
        %546 = vmatprep.subr.mxu0 %v308
        %547 = vmatpush1.msra.mxu0 %v307
        %548 = vmatprep.subr.mxu0 %v312
        %549 = vmatpush1.msra.mxu0 %v311
        %550 = vmatprep.subr.mxu0 %v316
        %551 = vmatpush1.msra.mxu0 %v315
        %552 = vmatprep.subr.mxu0 0.0
        %553 = vmatpush1.msra.mxu0 0.0
        %554 = vmatprep.subr.mxu0 0.0
        %555 = vmatpush1.msra.mxu0 0.0
        %556 = vmatprep.subr.mxu0 0.0
        %557 = vmatpush1.msra.mxu0 0.0
        %558 = vmatprep.subr.mxu0 0.0
        %559 = vmatpush1.msra.mxu0 0.0
        %560 = vmatprep.subr.mxu0 0.0
        %561 = vmatpush1.msra.mxu0 0.0
        %562 = vmatprep.subr.mxu0 0.0
        %563 = vmatpush1.msra.mxu0 0.0
        %564 = vmatprep.subr.mxu0 0.0
        %565 = vmatpush1.msra.mxu0 0.0
        %566 = vmatprep.subr.mxu0 0.0
        %567 = vmatpush1.msra.mxu0 0.0
        %568 = vmatprep.subr.mxu0 0.0
        %569 = vmatpush1.msra.mxu0 0.0
        %570 = vmatprep.subr.mxu0 0.0
        %571 = vmatpush1.msra.mxu0 0.0
        %572 = vmatprep.subr.mxu0 0.0
        %573 = vmatpush1.msra.mxu0 0.0
        %574 = vmatprep.subr.mxu0 0.0
        %575 = vmatpush1.msra.mxu0 0.0
        %576 = vmatprep.subr.mxu0 0.0
        %577 = vmatpush1.msra.mxu0 0.0
        %578 = vmatprep.subr.mxu0 0.0
        %579 = vmatpush1.msra.mxu0 0.0
        %580 = vmatprep.subr.mxu0 0.0
        %581 = vmatpush1.msra.mxu0 0.0
        %582 = vmatprep.subr.mxu0 0.0
        %583 = vmatpush1.msra.mxu0 0.0
        %584 = vmatprep.mubr.f32.mxu0 0.0
        %585 = vmatmul.mubr.f32.gmra.mrb[0].mxu0 %v505
        %v586 = vpop.f32.mrb[0].mxu0
        %v587 = vadd.f32 0.0, %v586
        %v588 = vpop.f32.mrb[0].mxu0
        %v589 = vadd.f32 0.0, %v588
        %590 = vdwg.mxu0
        %591 = vmatprep.subr.mxu0 %v258
        %592 = vmatpush1.msra.mxu0 %v257
        %593 = vmatprep.subr.mxu0 %v262
        %594 = vmatpush1.msra.mxu0 %v261
        %595 = vmatprep.subr.mxu0 %v266
        %596 = vmatpush1.msra.mxu0 %v265
        %597 = vmatprep.subr.mxu0 %v270
        %598 = vmatpush1.msra.mxu0 %v269
        %599 = vmatprep.subr.mxu0 %v274
        %600 = vmatpush1.msra.mxu0 %v273
        %601 = vmatprep.subr.mxu0 %v278
        %602 = vmatpush1.msra.mxu0 %v277
        %603 = vmatprep.subr.mxu0 %v282
        %604 = vmatpush1.msra.mxu0 %v281
        %605 = vmatprep.subr.mxu0 %v286
        %606 = vmatpush1.msra.mxu0 %v285
        %607 = vmatprep.subr.mxu0 %v290
        %608 = vmatpush1.msra.mxu0 %v289
        %609 = vmatprep.subr.mxu0 %v294
        %610 = vmatpush1.msra.mxu0 %v293
        %611 = vmatprep.subr.mxu0 %v298
        %612 = vmatpush1.msra.mxu0 %v297
        %613 = vmatprep.subr.mxu0 %v302
        %614 = vmatpush1.msra.mxu0 %v301
        %615 = vmatprep.subr.mxu0 %v306
        %616 = vmatpush1.msra.mxu0 %v305
        %617 = vmatprep.subr.mxu0 %v310
        %618 = vmatpush1.msra.mxu0 %v309
        %619 = vmatprep.subr.mxu0 %v314
        %620 = vmatpush1.msra.mxu0 %v313
        %621 = vmatprep.subr.mxu0 %v318
        %622 = vmatpush1.msra.mxu0 %v317
        %623 = vmatprep.subr.mxu0 0.0
        %624 = vmatpush1.msra.mxu0 0.0
        %625 = vmatprep.subr.mxu0 0.0
        %626 = vmatpush1.msra.mxu0 0.0
        %627 = vmatprep.subr.mxu0 0.0
        %628 = vmatpush1.msra.mxu0 0.0
        %629 = vmatprep.subr.mxu0 0.0
        %630 = vmatpush1.msra.mxu0 0.0
        %631 = vmatprep.subr.mxu0 0.0
        %632 = vmatpush1.msra.mxu0 0.0
        %633 = vmatprep.subr.mxu0 0.0
        %634 = vmatpush1.msra.mxu0 0.0
        %635 = vmatprep.subr.mxu0 0.0
        %636 = vmatpush1.msra.mxu0 0.0
        %637 = vmatprep.subr.mxu0 0.0
        %638 = vmatpush1.msra.mxu0 0.0
        %639 = vmatprep.subr.mxu0 0.0
        %640 = vmatpush1.msra.mxu0 0.0
        %641 = vmatprep.subr.mxu0 0.0
        %642 = vmatpush1.msra.mxu0 0.0
        %643 = vmatprep.subr.mxu0 0.0
        %644 = vmatpush1.msra.mxu0 0.0
        %645 = vmatprep.subr.mxu0 0.0
        %646 = vmatpush1.msra.mxu0 0.0
        %647 = vmatprep.subr.mxu0 0.0
        %648 = vmatpush1.msra.mxu0 0.0
        %649 = vmatprep.subr.mxu0 0.0
        %650 = vmatpush1.msra.mxu0 0.0
        %651 = vmatprep.subr.mxu0 0.0
        %652 = vmatpush1.msra.mxu0 0.0
        %653 = vmatprep.subr.mxu0 0.0
        %654 = vmatpush1.msra.mxu0 0.0
        %655 = vmatprep.mubr.f32.mxu0 0.0
        %656 = vmatmul.mubr.f32.gmra.mrb[0].mxu0 %v505
        %v657 = vpop.f32.mrb[0].mxu0
        %v658 = vadd.f32 0.0, %v657
        %v659 = vpop.f32.mrb[0].mxu0
        %v660 = vadd.f32 0.0, %v659
        %661 = vdwg.mxu0
        %v662 = vadd.f32 %v516, %v587
        %v663 = vadd.f32 %v517, %v589
        %v664 = vadd.f32 %v518, %v658
        %v665 = vadd.f32 %v519, %v660
        %v666 = vmul.f32 %v662, 0.5
        %v667 = vmul.f32 %v663, 0.5
        %v668 = vtanh.pop %v666
        %v669 = vtanh.pop %v667
        %v670 = vadd.f32 %v668, 1.0
        %v671 = vadd.f32 %v669, 1.0
        %v672 = vmul.f32 %v670, 0.5
        %v673 = vmul.f32 %v671, 0.5
        %v674 = vtanh.pop %v664
        %v675 = vmul.f32 %v665, 0.5
        %v676 = vtanh.pop %v675
        %v677 = vadd.f32 %v676, 1.0
        %v678 = vmul.f32 %v677, 0.5
        %v679 = vmul.f32 %v673, %v506
        %v680 = vmul.f32 %v672, %v674
        %v681 = vadd.f32 %v679, %v680
        %v682 = vtanh.pop %v681
        %v683 = vmul.f32 %v678, %v682
        %v684 = vstv %s512
        %vm685 = vcmp.gt.s32.totalorder %v254, %v684
        %v686 = vsel %vm685, 1, 0
        %687 = vset.pattern.permute.xlu0 0
        %688 = vperm.xlu0 %687, %v686
        %v689 = vpop.permute.xlu0 %688
        %vm690 = vcmp.eq.s32.totalorder %v689, 1
        %v691 = vsel %vm690, %v683, %v505
        %v692 = vsel %vm690, %v681, %v506
        %s693 = ssub.s32 2, %s25
        %s694 = sadd.s32 %s322, 2
        %s695 = smul.u32 %s694, 2
        %s696 = ssub.s32 11, %s695
        %s697 = smul.u32 %s25, %s696
        %s698 = sadd.s32 %s694, %s697
        %s699 = smul.u32 %s693, 4
        %s700 = smul.addr %s699, 8
        %s701 = scalar_lea.vmem %s214, %s700 [#allocation4]
        %v702 = vld [vmem:[%s701] sm:$0xff]
        %v703 = vld [vmem:[%s701 + $0x8] sm:$0xff]
        %v704 = vld [vmem:[%s701 + $0x10] sm:$0xff]
        %v705 = vld [vmem:[%s701 + $0x18] sm:$0xff]
        %706 = vmatprep.subr.mxu0 %v256
        %707 = vmatpush1.msra.mxu0 %v255
        %708 = vmatprep.subr.mxu0 %v260
        %709 = vmatpush1.msra.mxu0 %v259
        %710 = vmatprep.subr.mxu0 %v264
        %711 = vmatpush1.msra.mxu0 %v263
        %712 = vmatprep.subr.mxu0 %v268
        %713 = vmatpush1.msra.mxu0 %v267
        %714 = vmatprep.subr.mxu0 %v272
        %715 = vmatpush1.msra.mxu0 %v271
        %716 = vmatprep.subr.mxu0 %v276
        %717 = vmatpush1.msra.mxu0 %v275
        %718 = vmatprep.subr.mxu0 %v280
        %719 = vmatpush1.msra.mxu0 %v279
        %720 = vmatprep.subr.mxu0 %v284
        %721 = vmatpush1.msra.mxu0 %v283
        %722 = vmatprep.subr.mxu0 %v288
        %723 = vmatpush1.msra.mxu0 %v287
        %724 = vmatprep.subr.mxu0 %v292
        %725 = vmatpush1.msra.mxu0 %v291
        %726 = vmatprep.subr.mxu0 %v296
        %727 = vmatpush1.msra.mxu0 %v295
        %728 = vmatprep.subr.mxu0 %v300
        %729 = vmatpush1.msra.mxu0 %v299
        %730 = vmatprep.subr.mxu0 %v304
        %731 = vmatpush1.msra.mxu0 %v303
        %732 = vmatprep.subr.mxu0 %v308
        %733 = vmatpush1.msra.mxu0 %v307
        %734 = vmatprep.subr.mxu0 %v312
        %735 = vmatpush1.msra.mxu0 %v311
        %736 = vmatprep.subr.mxu0 %v316
        %737 = vmatpush1.msra.mxu0 %v315
        %738 = vmatprep.subr.mxu0 0.0
        %739 = vmatpush1.msra.mxu0 0.0
        %740 = vmatprep.subr.mxu0 0.0
        %741 = vmatpush1.msra.mxu0 0.0
        %742 = vmatprep.subr.mxu0 0.0
        %743 = vmatpush1.msra.mxu0 0.0
        %744 = vmatprep.subr.mxu0 0.0
        %745 = vmatpush1.msra.mxu0 0.0
        %746 = vmatprep.subr.mxu0 0.0
        %747 = vmatpush1.msra.mxu0 0.0
        %748 = vmatprep.subr.mxu0 0.0
        %749 = vmatpush1.msra.mxu0 0.0
        %750 = vmatprep.subr.mxu0 0.0
        %751 = vmatpush1.msra.mxu0 0.0
        %752 = vmatprep.subr.mxu0 0.0
        %753 = vmatpush1.msra.mxu0 0.0
        %754 = vmatprep.subr.mxu0 0.0
        %755 = vmatpush1.msra.mxu0 0.0
        %756 = vmatprep.subr.mxu0 0.0
        %757 = vmatpush1.msra.mxu0 0.0
        %758 = vmatprep.subr.mxu0 0.0
        %759 = vmatpush1.msra.mxu0 0.0
        %760 = vmatprep.subr.mxu0 0.0
        %761 = vmatpush1.msra.mxu0 0.0
        %762 = vmatprep.subr.mxu0 0.0
        %763 = vmatpush1.msra.mxu0 0.0
        %764 = vmatprep.subr.mxu0 0.0
        %765 = vmatpush1.msra.mxu0 0.0
        %766 = vmatprep.subr.mxu0 0.0
        %767 = vmatpush1.msra.mxu0 0.0
        %768 = vmatprep.subr.mxu0 0.0
        %769 = vmatpush1.msra.mxu0 0.0
        %770 = vmatprep.mubr.f32.mxu0 0.0
        %771 = vmatmul.mubr.f32.gmra.mrb[0].mxu0 %v691
        %v772 = vpop.f32.mrb[0].mxu0
        %v773 = vadd.f32 0.0, %v772
        %v774 = vpop.f32.mrb[0].mxu0
        %v775 = vadd.f32 0.0, %v774
        %776 = vdwg.mxu0
        %777 = vmatprep.subr.mxu0 %v258
        %778 = vmatpush1.msra.mxu0 %v257
        %779 = vmatprep.subr.mxu0 %v262
        %780 = vmatpush1.msra.mxu0 %v261
        %781 = vmatprep.subr.mxu0 %v266
        %782 = vmatpush1.msra.mxu0 %v265
        %783 = vmatprep.subr.mxu0 %v270
        %784 = vmatpush1.msra.mxu0 %v269
        %785 = vmatprep.subr.mxu0 %v274
        %786 = vmatpush1.msra.mxu0 %v273
        %787 = vmatprep.subr.mxu0 %v278
        %788 = vmatpush1.msra.mxu0 %v277
        %789 = vmatprep.subr.mxu0 %v282
        %790 = vmatpush1.msra.mxu0 %v281
        %791 = vmatprep.subr.mxu0 %v286
        %792 = vmatpush1.msra.mxu0 %v285
        %793 = vmatprep.subr.mxu0 %v290
        %794 = vmatpush1.msra.mxu0 %v289
        %795 = vmatprep.subr.mxu0 %v294
        %796 = vmatpush1.msra.mxu0 %v293
        %797 = vmatprep.subr.mxu0 %v298
        %798 = vmatpush1.msra.mxu0 %v297
        %799 = vmatprep.subr.mxu0 %v302
        %800 = vmatpush1.msra.mxu0 %v301
        %801 = vmatprep.subr.mxu0 %v306
        %802 = vmatpush1.msra.mxu0 %v305
        %803 = vmatprep.subr.mxu0 %v310
        %804 = vmatpush1.msra.mxu0 %v309
        %805 = vmatprep.subr.mxu0 %v314
        %806 = vmatpush1.msra.mxu0 %v313
        %807 = vmatprep.subr.mxu0 %v318
        %808 = vmatpush1.msra.mxu0 %v317
        %809 = vmatprep.subr.mxu0 0.0
        %810 = vmatpush1.msra.mxu0 0.0
        %811 = vmatprep.subr.mxu0 0.0
        %812 = vmatpush1.msra.mxu0 0.0
        %813 = vmatprep.subr.mxu0 0.0
        %814 = vmatpush1.msra.mxu0 0.0
        %815 = vmatprep.subr.mxu0 0.0
        %816 = vmatpush1.msra.mxu0 0.0
        %817 = vmatprep.subr.mxu0 0.0
        %818 = vmatpush1.msra.mxu0 0.0
        %819 = vmatprep.subr.mxu0 0.0
        %820 = vmatpush1.msra.mxu0 0.0
        %821 = vmatprep.subr.mxu0 0.0
        %822 = vmatpush1.msra.mxu0 0.0
        %823 = vmatprep.subr.mxu0 0.0
        %824 = vmatpush1.msra.mxu0 0.0
        %825 = vmatprep.subr.mxu0 0.0
        %826 = vmatpush1.msra.mxu0 0.0
        %827 = vmatprep.subr.mxu0 0.0
        %828 = vmatpush1.msra.mxu0 0.0
        %829 = vmatprep.subr.mxu0 0.0
        %830 = vmatpush1.msra.mxu0 0.0
        %831 = vmatprep.subr.mxu0 0.0
        %832 = vmatpush1.msra.mxu0 0.0
        %833 = vmatprep.subr.mxu0 0.0
        %834 = vmatpush1.msra.mxu0 0.0
        %835 = vmatprep.subr.mxu0 0.0
        %836 = vmatpush1.msra.mxu0 0.0
        %837 = vmatprep.subr.mxu0 0.0
        %838 = vmatpush1.msra.mxu0 0.0
        %839 = vmatprep.subr.mxu0 0.0
        %840 = vmatpush1.msra.mxu0 0.0
        %841 = vmatprep.mubr.f32.mxu0 0.0
        %842 = vmatmul.mubr.f32.gmra.mrb[0].mxu0 %v691
        %v843 = vpop.f32.mrb[0].mxu0
        %v844 = vadd.f32 0.0, %v843
        %v845 = vpop.f32.mrb[0].mxu0
        %v846 = vadd.f32 0.0, %v845
        %847 = vdwg.mxu0
        %v848 = vadd.f32 %v702, %v773
        %v849 = vadd.f32 %v703, %v775
        %v850 = vadd.f32 %v704, %v844
        %v851 = vadd.f32 %v705, %v846
        %v852 = vmul.f32 %v848, 0.5
        %v853 = vmul.f32 %v849, 0.5
        %v854 = vtanh.pop %v852
        %v855 = vtanh.pop %v853
        %v856 = vadd.f32 %v854, 1.0
        %v857 = vadd.f32 %v855, 1.0
        %v858 = vmul.f32 %v856, 0.5
        %v859 = vmul.f32 %v857, 0.5
        %v860 = vtanh.pop %v850
        %v861 = vmul.f32 %v851, 0.5
        %v862 = vtanh.pop %v861
        %v863 = vadd.f32 %v862, 1.0
        %v864 = vmul.f32 %v863, 0.5
        %v865 = vmul.f32 %v859, %v692
        %v866 = vmul.f32 %v858, %v860
        %v867 = vadd.f32 %v865, %v866
        %v868 = vtanh.pop %v867
        %v869 = vmul.f32 %v864, %v868
        %v870 = vstv %s698
        %vm871 = vcmp.gt.s32.totalorder %v254, %v870
        %v872 = vsel %vm871, 1, 0
        %873 = vset.pattern.permute.xlu0 0
        %874 = vperm.xlu0 %873, %v872
        %v875 = vpop.permute.xlu0 %874
        %vm876 = vcmp.eq.s32.totalorder %v875, 1
        %v877 = vsel %vm876, %v869, %v691
        %v878 = vsel %vm876, %v867, %v692
        %s879 = smul.u32 %s25, 4294967293
        %s880 = sadd.s32 %s879, 3
        %s881 = sadd.s32 %s322, 3
        %s882 = smul.u32 %s881, 2
        %s883 = ssub.s32 11, %s882
        %s884 = smul.u32 %s25, %s883
        %s885 = sadd.s32 %s881, %s884
        %s886 = smul.u32 %s880, 4
        %s887 = smul.addr %s886, 8
        %s888 = scalar_lea.vmem %s214, %s887 [#allocation4]
        %v889 = vld [vmem:[%s888] sm:$0xff]
        %v890 = vld [vmem:[%s888 + $0x8] sm:$0xff]
        %v891 = vld [vmem:[%s888 + $0x10] sm:$0xff]
        %v892 = vld [vmem:[%s888 + $0x18] sm:$0xff]
        %893 = vmatprep.subr.mxu0 %v256
        %894 = vmatpush1.msra.mxu0 %v255
        %895 = vmatprep.subr.mxu0 %v260
        %896 = vmatpush1.msra.mxu0 %v259
        %897 = vmatprep.subr.mxu0 %v264
        %898 = vmatpush1.msra.mxu0 %v263
        %899 = vmatprep.subr.mxu0 %v268
        %900 = vmatpush1.msra.mxu0 %v267
        %901 = vmatprep.subr.mxu0 %v272
        %902 = vmatpush1.msra.mxu0 %v271
        %903 = vmatprep.subr.mxu0 %v276
        %904 = vmatpush1.msra.mxu0 %v275
        %905 = vmatprep.subr.mxu0 %v280
        %906 = vmatpush1.msra.mxu0 %v279
        %907 = vmatprep.subr.mxu0 %v284
        %908 = vmatpush1.msra.mxu0 %v283
        %909 = vmatprep.subr.mxu0 %v288
        %910 = vmatpush1.msra.mxu0 %v287
        %911 = vmatprep.subr.mxu0 %v292
        %912 = vmatpush1.msra.mxu0 %v291
        %913 = vmatprep.subr.mxu0 %v296
        %914 = vmatpush1.msra.mxu0 %v295
        %915 = vmatprep.subr.mxu0 %v300
        %916 = vmatpush1.msra.mxu0 %v299
        %917 = vmatprep.subr.mxu0 %v304
        %918 = vmatpush1.msra.mxu0 %v303
        %919 = vmatprep.subr.mxu0 %v308
        %920 = vmatpush1.msra.mxu0 %v307
        %921 = vmatprep.subr.mxu0 %v312
        %922 = vmatpush1.msra.mxu0 %v311
        %923 = vmatprep.subr.mxu0 %v316
        %924 = vmatpush1.msra.mxu0 %v315
        %925 = vmatprep.subr.mxu0 0.0
        %926 = vmatpush1.msra.mxu0 0.0
        %927 = vmatprep.subr.mxu0 0.0
        %928 = vmatpush1.msra.mxu0 0.0
        %929 = vmatprep.subr.mxu0 0.0
        %930 = vmatpush1.msra.mxu0 0.0
        %931 = vmatprep.subr.mxu0 0.0
        %932 = vmatpush1.msra.mxu0 0.0
        %933 = vmatprep.subr.mxu0 0.0
        %934 = vmatpush1.msra.mxu0 0.0
        %935 = vmatprep.subr.mxu0 0.0
        %936 = vmatpush1.msra.mxu0 0.0
        %937 = vmatprep.subr.mxu0 0.0
        %938 = vmatpush1.msra.mxu0 0.0
        %939 = vmatprep.subr.mxu0 0.0
        %940 = vmatpush1.msra.mxu0 0.0
        %941 = vmatprep.subr.mxu0 0.0
        %942 = vmatpush1.msra.mxu0 0.0
        %943 = vmatprep.subr.mxu0 0.0
        %944 = vmatpush1.msra.mxu0 0.0
        %945 = vmatprep.subr.mxu0 0.0
        %946 = vmatpush1.msra.mxu0 0.0
        %947 = vmatprep.subr.mxu0 0.0
        %948 = vmatpush1.msra.mxu0 0.0
        %949 = vmatprep.subr.mxu0 0.0
        %950 = vmatpush1.msra.mxu0 0.0
        %951 = vmatprep.subr.mxu0 0.0
        %952 = vmatpush1.msra.mxu0 0.0
        %953 = vmatprep.subr.mxu0 0.0
        %954 = vmatpush1.msra.mxu0 0.0
        %955 = vmatprep.subr.mxu0 0.0
        %956 = vmatpush1.msra.mxu0 0.0
        %957 = vmatprep.mubr.f32.mxu0 0.0
        %958 = vmatmul.mubr.f32.gmra.mrb[0].mxu0 %v877
        %v959 = vpop.f32.mrb[0].mxu0
        %v960 = vadd.f32 0.0, %v959
        %v961 = vpop.f32.mrb[0].mxu0
        %v962 = vadd.f32 0.0, %v961
        %963 = vdwg.mxu0
        %964 = vmatprep.subr.mxu0 %v258
        %965 = vmatpush1.msra.mxu0 %v257
        %966 = vmatprep.subr.mxu0 %v262
        %967 = vmatpush1.msra.mxu0 %v261
        %968 = vmatprep.subr.mxu0 %v266
        %969 = vmatpush1.msra.mxu0 %v265
        %970 = vmatprep.subr.mxu0 %v270
        %971 = vmatpush1.msra.mxu0 %v269
        %972 = vmatprep.subr.mxu0 %v274
        %973 = vmatpush1.msra.mxu0 %v273
        %974 = vmatprep.subr.mxu0 %v278
        %975 = vmatpush1.msra.mxu0 %v277
        %976 = vmatprep.subr.mxu0 %v282
        %977 = vmatpush1.msra.mxu0 %v281
        %978 = vmatprep.subr.mxu0 %v286
        %979 = vmatpush1.msra.mxu0 %v285
        %980 = vmatprep.subr.mxu0 %v290
        %981 = vmatpush1.msra.mxu0 %v289
        %982 = vmatprep.subr.mxu0 %v294
        %983 = vmatpush1.msra.mxu0 %v293
        %984 = vmatprep.subr.mxu0 %v298
        %985 = vmatpush1.msra.mxu0 %v297
        %986 = vmatprep.subr.mxu0 %v302
        %987 = vmatpush1.msra.mxu0 %v301
        %988 = vmatprep.subr.mxu0 %v306
        %989 = vmatpush1.msra.mxu0 %v305
        %990 = vmatprep.subr.mxu0 %v310
        %991 = vmatpush1.msra.mxu0 %v309
        %992 = vmatprep.subr.mxu0 %v314
        %993 = vmatpush1.msra.mxu0 %v313
        %994 = vmatprep.subr.mxu0 %v318
        %995 = vmatpush1.msra.mxu0 %v317
        %996 = vmatprep.subr.mxu0 0.0
        %997 = vmatpush1.msra.mxu0 0.0
        %998 = vmatprep.subr.mxu0 0.0
        %999 = vmatpush1.msra.mxu0 0.0
        %1000 = vmatprep.subr.mxu0 0.0
        %1001 = vmatpush1.msra.mxu0 0.0
        %1002 = vmatprep.subr.mxu0 0.0
        %1003 = vmatpush1.msra.mxu0 0.0
        %1004 = vmatprep.subr.mxu0 0.0
        %1005 = vmatpush1.msra.mxu0 0.0
        %1006 = vmatprep.subr.mxu0 0.0
        %1007 = vmatpush1.msra.mxu0 0.0
        %1008 = vmatprep.subr.mxu0 0.0
        %1009 = vmatpush1.msra.mxu0 0.0
        %1010 = vmatprep.subr.mxu0 0.0
        %1011 = vmatpush1.msra.mxu0 0.0
        %1012 = vmatprep.subr.mxu0 0.0
        %1013 = vmatpush1.msra.mxu0 0.0
        %1014 = vmatprep.subr.mxu0 0.0
        %1015 = vmatpush1.msra.mxu0 0.0
        %1016 = vmatprep.subr.mxu0 0.0
        %1017 = vmatpush1.msra.mxu0 0.0
        %1018 = vmatprep.subr.mxu0 0.0
        %1019 = vmatpush1.msra.mxu0 0.0
        %1020 = vmatprep.subr.mxu0 0.0
        %1021 = vmatpush1.msra.mxu0 0.0
        %1022 = vmatprep.subr.mxu0 0.0
        %1023 = vmatpush1.msra.mxu0 0.0
        %1024 = vmatprep.subr.mxu0 0.0
        %1025 = vmatpush1.msra.mxu0 0.0
        %1026 = vmatprep.subr.mxu0 0.0
        %1027 = vmatpush1.msra.mxu0 0.0
        %1028 = vmatprep.mubr.f32.mxu0 0.0
        %1029 = vmatmul.mubr.f32.gmra.mrb[0].mxu0 %v877
        %v1030 = vpop.f32.mrb[0].mxu0
        %v1031 = vadd.f32 0.0, %v1030
        %v1032 = vpop.f32.mrb[0].mxu0
        %v1033 = vadd.f32 0.0, %v1032
        %1034 = vdwg.mxu0
        %v1035 = vadd.f32 %v889, %v960
        %v1036 = vadd.f32 %v890, %v962
        %v1037 = vadd.f32 %v891, %v1031
        %v1038 = vadd.f32 %v892, %v1033
        %v1039 = vmul.f32 %v1035, 0.5
        %v1040 = vmul.f32 %v1036, 0.5
        %v1041 = vtanh.pop %v1039
        %v1042 = vtanh.pop %v1040
        %v1043 = vadd.f32 %v1041, 1.0
        %v1044 = vadd.f32 %v1042, 1.0
        %v1045 = vmul.f32 %v1043, 0.5
        %v1046 = vmul.f32 %v1044, 0.5
        %v1047 = vtanh.pop %v1037
        %v1048 = vmul.f32 %v1038, 0.5
        %v1049 = vtanh.pop %v1048
        %v1050 = vadd.f32 %v1049, 1.0
        %v1051 = vmul.f32 %v1050, 0.5
        %v1052 = vmul.f32 %v1046, %v878
        %v1053 = vmul.f32 %v1045, %v1047
        %v1054 = vadd.f32 %v1052, %v1053
        %v1055 = vtanh.pop %v1054
        %v1056 = vmul.f32 %v1051, %v1055
        %v1057 = vstv %s885
        %vm1058 = vcmp.gt.s32.totalorder %v254, %v1057
        %v1059 = vsel %vm1058, 1, 0
        %1060 = vset.pattern.permute.xlu0 0
        %1061 = vperm.xlu0 %1060, %v1059
        %v1062 = vpop.permute.xlu0 %1061
        %vm1063 = vcmp.eq.s32.totalorder %v1062, 1
        %v1064 = vsel %vm1063, %v1056, %v877
        %v1065 = vsel %vm1063, %v1054, %v878
        %1066 = vst [vmem:[#allocation2] sm:$0xff] %v1064
        %1067 = vst [vmem:[#allocation3] sm:$0xff] %v1065
        %p1068 = scmp.eq.s32.totalorder %s26, 2
        // Predicated region
        $region45: #{tpu_custom_call.1} parent=31 // pred_check
          %p1069 = pneg %p1068
        $region46: #{tpu_custom_call.1} parent=31 // pred_check_branch
          %1071 = sbr.rel (%p1069) target = $region48
        $region47: #{tpu_custom_call.1} parent=31 // pred_region
          %1072 = vst [vmem:[%s240] sm:$0xff] %v1064
        $region48: #{tpu_custom_call.1} parent=31 // pred_fallthru
          _
        %s1073 = sand.u32 %s124, 1
        %s1074 = scalar_lea.sflag [#allocation6], %s1073
        %s1075 = sand.u32 %s124, 1
        %s1076 = smul.addr %s1075, 8
        %s1077 = scalar_lea.vmem [#allocation9], %s1076
        // Predicated region
        $region49: #{tpu_custom_call.1} parent=31 // pred_check
          %p1078 = pneg %p134
        $region50: #{tpu_custom_call.1} parent=31 // pred_check_branch
          %1080 = sbr.rel (%p1078) target = $region52
        $region51: #{tpu_custom_call.1} parent=31 // pred_region
          %s1082 = ssub.s32 128, 128
          %1083 = vsyncadd %s1074, %s1082
          %s1084 = smul.addr %s25, 128
          %s1085 = scalar_lea.hbm %s3, %s1084
          %s1087 = sshll.u32 %s1077, 4
          %s1088 = int_to_ptr.vmem [resolvable:$true] %s1087
          %1090 = dma.vmem_to_hbm [thread:$0]  %s1088, 128, %s1085, %s1074
        $region52: #{tpu_custom_call.1} parent=31 // pred_fallthru
          _
      $region32: #{tpu_custom_call.1} parent=5 // pred_fallthru
        _
      %p1091 = scmp.le.s32.totalorder 2, %s16
      // Predicated region
      $region53: #{tpu_custom_call.1} parent=5 // pred_check
        %p1092 = pneg %p1091
      $region54: #{tpu_custom_call.1} parent=5 // pred_check_branch
        %1094 = sbr.rel (%p1092) target = $region56
      $region55: #{tpu_custom_call.1} parent=5 // pred_region
        %s1095 = ssub.s32 %s16, 2
        // Predicated region
        $region57: #{tpu_custom_call.1} parent=55 // pred_check
          %p1096 = pneg %p140
        $region58: #{tpu_custom_call.1} parent=55 // pred_check_branch
          %1098 = sbr.rel (%p1096) target = $region60
        $region59: #{tpu_custom_call.1} parent=55 // pred_region
          %s1099 = sand.u32 %s125, 1
          %s1100 = scalar_lea.sflag [#allocation6], %s1099
          %s1101 = sand.u32 %s125, 1
          %s1102 = smul.addr %s1101, 8
          %s1103 = scalar_lea.vmem [#allocation9], %s1102
          %1104 = dma.done %s1100, 128
        $region60: #{tpu_custom_call.1} parent=55 // pred_fallthru
          _
      $region56: #{tpu_custom_call.1} parent=5 // pred_fallthru
        _
    $region6: #{tpu_custom_call.1} parent=1 // loop_footer
      %s20 = sadd.s32 1, %s16
    $region7: #{tpu_custom_call.1} parent=1 // loop_footer_branch
      %15 = sbr.rel target = $region3
    $region8: #{tpu_custom_call.1} parent=1 // loop_exit
      _
    %1105 = vsyncpa [#allocation5], 1
    %s1106 = scalar_lea.sflag [#allocation5], 1
    %1107 = vsyncpa %s1106, 1
    %1108 = vsyncpa [#allocation8], 1
    %1109 = vsyncpa [#allocation6], 1
    %s1110 = scalar_lea.sflag [#allocation6], 1
    %1111 = vsyncpa %s1110, 1

</llo_original>
